<compile_context>
chip_gen: v6e
topology: v6e:2x2x1
jax: 0.10.0
libtpu: 0.0.40
codegen_flags: <defaults>
</compile_context>

<pallas_src>
import functools

import jax
import jax.numpy as jnp
from jax import lax
from jax.experimental import pallas as pl
from jax.experimental.pallas import tpu as pltpu


# ----------------------------------------------------------------------------- helpers
def _round_up(n: int, m: int) -> int:
    return (n + m - 1) // m * m


def _pad_to(a, shape):
    return jnp.pad(a, [(0, s - d) for d, s in zip(a.shape, shape)])


def _has_bf16_eup() -> bool:
    """bf16 transcendental (EUP) path exists on v6e / v7x; keep f32 tanh otherwise."""
    try:
        kind = jax.devices()[0].device_kind.lower().replace(" ", "")
    except Exception:
        return False
    return any(t in kind for t in ("v6", "v7", "tpu6", "tpu7"))


# ----------------------------------------------------------------------------- kernel
def fused_value_kernel(
    packed_ref,                                        # [tile, obs+2*act]  (bf16)
    w0c_ref, b0e_ref, w1e_ref, b1e_ref, w2e_ref, b2e_ref,   # ep net (+ fused layer-0)
    w0eu_ref, b0u_ref, w1u_ref, b1u_ref, w2r_ref,            # up net
    b2u_ref,                                           # scalar head bias (SMEM)
    o_ref,                                             # [8, tile//8]  packed values
    *, act_dtype,
):
    cdt = w1e_ref.dtype                 # matmul operand dtype (bf16); accumulate in f32
    h0e = b0e_ref.shape[1]              # ep-net layer-0 width (128-lane padded)

    def mm(lhs, w_ref):
        return jnp.dot(lhs.astype(cdt), w_ref[...],
                       preferred_element_type=jnp.float32)

    def act(pre_f32):                   # tanh in bf16 on v6e/v7x, f32 on v5e
        return jnp.tanh(pre_f32.astype(act_dtype))

    xin = packed_ref[...]               # [x | lst_a | a], already bf16

    # Fused layer 0 for BOTH nets:
    #   [x|la|a] @ [[W0x_ep | W0x_up], [W0la_ep | 0], [0 | W0a_up]]
    comb = mm(xin, w0c_ref)             # (tile, h0e + h0u), f32 accumulation
    pre_ep0 = comb[:, :h0e]             # 128-aligned lane slices (no relayout)
    pre_up0 = comb[:, h0e:]

    # ep net (tanh head) -- ep never leaves VMEM; padded lanes stay exactly 0.
    h = act(pre_ep0 + b0e_ref[...])
    h = act(mm(h, w1e_ref) + b1e_ref[...])
    ep = act(mm(h, w2e_ref) + b2e_ref[...])

    # up net (linear value head).
    g = act(pre_up0 + mm(ep, w0eu_ref) + b0u_ref[...])
    g = act(mm(g, w1u_ref) + b1u_ref[...])
    g = g.astype(cdt)

    # Packed, lane-dense value head: split the row tile into 8 sub-chunks and land
    # each chunk's values on the lanes of one output sublane -> every element of the
    # (8, tile//8) slab is real data (no 8x output write amplification).
    tile = g.shape[0]
    chunk = tile // 8
    w2 = w2r_ref[...]                   # (1, h1u) bf16
    b2 = b2u_ref[0]                     # scalar (SMEM)
    for r in range(8):
        gr = g[r * chunk:(r + 1) * chunk, :]            # static sublane slice
        vr = lax.dot_general(w2, gr,                    # (1,H) x (chunk,H) -> (1,chunk)
                             dimension_numbers=(((1,), (1,)), ((), ())),
                             preferred_element_type=jnp.float32) + b2
        o_ref[pl.ds(r, 1), :] = vr.astype(o_ref.dtype)


# ----------------------------------------------------------------------------- params
def init_mlp(key, dims):
    """Deterministic synthetic 3-layer MLP params; biases kept 2-D (1, H)."""
    params = []
    for din, dout in zip(dims[:-1], dims[1:]):
        key, kw, kb = jax.random.split(key, 3)
        w = jax.random.normal(kw, (din, dout), jnp.float32) / jnp.sqrt(din)
        b = 0.1 * jax.random.normal(kb, (1, dout), jnp.float32)
        params += [w, b]
    return params


def prepare_value_params(ep_params, up_params, obs_dim, act_dim, ep_dim,
                         compute_dtype=jnp.bfloat16, lane=128):
    """One-time prep: build the block-structured fused layer-0 weight, zero-pad
    hidden / ep dims to 128 lanes, cast matmul weights to bf16."""
    w0e, b0e, w1e, b1e, w2e, b2e = ep_params
    w0u, b0u, w1u, b1u, w2u, b2u = up_params
    cd = compute_dtype

    h0e = _round_up(w0e.shape[1], lane)
    h1e = _round_up(w1e.shape[1], lane)
    epp = _round_up(ep_dim, lane)
    h0u = _round_up(w0u.shape[1], lane)
    h1u = _round_up(w1u.shape[1], lane)

    # Fused layer-0 weight for the packed [x | lst_a | a] input:
    #   [[ W0x_ep | W0x_up ],
    #    [ W0la_ep|   0    ],
    #    [   0    | W0a_up ]]
    w0x_ep = _pad_to(w0e[:obs_dim], (obs_dim, h0e))
    w0l_ep = _pad_to(w0e[obs_dim:], (act_dim, h0e))
    w0x_up = _pad_to(w0u[:obs_dim], (obs_dim, h0u))
    w0a_up = _pad_to(w0u[obs_dim + ep_dim:], (act_dim, h0u))
    w0_comb = jnp.concatenate([
        jnp.concatenate([w0x_ep, w0x_up], axis=1),
        jnp.concatenate([w0l_ep, jnp.zeros((act_dim, h0u), jnp.float32)], axis=1),
        jnp.concatenate([jnp.zeros((act_dim, h0e), jnp.float32), w0a_up], axis=1),
    ], axis=0).astype(cd)                                   # (obs+2*act, h0e+h0u)

    b0_ep = _pad_to(b0e.reshape(1, -1), (1, h0e)).astype(jnp.float32)
    w1_ep = _pad_to(w1e, (h0e, h1e)).astype(cd)
    b1_ep = _pad_to(b1e.reshape(1, -1), (1, h1e)).astype(jnp.float32)
    w2_ep = _pad_to(w2e, (h1e, epp)).astype(cd)
    b2_ep = _pad_to(b2e.reshape(1, -1), (1, epp)).astype(jnp.float32)

    w0e_up = _pad_to(w0u[obs_dim:obs_dim + ep_dim], (epp, h0u)).astype(cd)
    b0_up = _pad_to(b0u.reshape(1, -1), (1, h0u)).astype(jnp.float32)
    w1_up = _pad_to(w1u, (h0u, h1u)).astype(cd)
    b1_up = _pad_to(b1u.reshape(1, -1), (1, h1u)).astype(jnp.float32)
    w2r_up = _pad_to(w2u.T, (1, h1u)).astype(cd)            # transposed bf16 head
    b2_up = b2u.reshape(-1).astype(jnp.float32)             # (1,) scalar -> SMEM

    return (w0_comb, b0_ep, w1_ep, b1_ep, w2_ep, b2_ep,
            w0e_up, b0_up, w1_up, b1_up, w2r_up, b2_up)


# ----------------------------------------------------------------------------- forward
def value_forward(x, lst_a, a, h, params, *, tile_n=1024):
    """Mirrors Value.forward with use_gt_env_feature=False, enhance_ep=False,
    freeze_ep=False, stop_pg_for_ep=False (inference semantics)."""
    B, T, obs_dim = x.shape
    N = B * T
    (w0c, b0e, w1e, b1e, w2e, b2e, w0eu, b0u, w1u, b1u, w2r, b2u) = params

    # Pack [x | lst_a | a] once; bf16 because the kernel casts matmul operands to
    # bf16 anyway -> halves per-row input HBM bytes at zero extra numeric loss.
    packed = jnp.concatenate(
        [x.reshape(N, -1), lst_a.reshape(N, -1), a.reshape(N, -1)], axis=-1
    ).astype(w0c.dtype)
    in_dim = packed.shape[1]

    # Row tile: large (amortize ~0.35us/step fixed cost), multiple of 8 so the
    # 8-way packed output head divides evenly.
    tile = min(tile_n, _round_up(N, 8))
    tile = max(8, (tile // 8) * 8)
    n_pad = _round_up(N, tile)
    n_tiles = n_pad // tile
    # v7x megacore: keep >= 2 grid steps whenever possible so both TCs get work.
    if n_tiles == 1 and N >= 16:
        tile = _round_up((N + 1) // 2, 8)
        n_pad = _round_up(N, tile)
        n_tiles = n_pad // tile
    if n_pad != N:  # ragged tail -> zero-pad rows (results sliced off below)
        packed = _pad_to(packed, (n_pad, in_dim))
    chunk = tile // 8

    act_dtype = jnp.bfloat16 if _has_bf16_eup() else jnp.float32
    kernel = functools.partial(fused_value_kernel, act_dtype=act_dtype)

    full = lambda w: pl.BlockSpec(w.shape, lambda i: (0, 0))  # fetched once, resident
    weight_specs = [full(w) for w in (w0c, b0e, w1e, b1e, w2e, b2e,
                                      w0eu, b0u, w1u, b1u, w2r)]

    out = pl.pallas_call(
        kernel,
        out_shape=jax.ShapeDtypeStruct((8 * n_tiles, chunk), jnp.float32),
        grid_spec=pltpu.PrefetchScalarGridSpec(
            num_scalar_prefetch=0,
            grid=(n_tiles,),
            in_specs=[pl.BlockSpec((tile, in_dim), lambda i: (i, 0))]
                     + weight_specs
                     + [pl.BlockSpec(memory_space=pltpu.MemorySpace.SMEM)],
            out_specs=pl.BlockSpec((8, chunk), lambda i: (i, 0)),
        ),
        compiler_params=pltpu.CompilerParams(
            dimension_semantics=("parallel",),  # row tiles shard across TCs (v7x)
        ),
    )(packed, w0c, b0e, w1e, b1e, w2e, b2e, w0eu, b0u, w1u, b1u, w2r, b2u)

    # Slab element [i*8 + r, c] holds the value of row i*tile + r*chunk + c.
    value = out.reshape(n_tiles, 8, chunk).reshape(n_pad)[:N].reshape(B, T, 1)

    # fc-only RNNBase: ep_h_out = [] and up_h_out = [] -> h passes through.
    h_out = list(h)
    return value, h_out


# ----------------------------------------------------------------------------- reference
def value_reference(x, lst_a, a, ep_params, up_params):
    def mlp(z, params, final_tanh):
        w0, b0, w1, b1, w2, b2 = params
        z = jnp.tanh(z @ w0 + b0)
        z = jnp.tanh(z @ w1 + b1)
        z = z @ w2 + b2
        return jnp.tanh(z) if final_tanh else z

    B, T, _ = x.shape
    x2 = x.reshape(B * T, -1)
    la2 = lst_a.reshape(B * T, -1)
    a2 = a.reshape(B * T, -1)
    ep = mlp(jnp.concatenate([x2, la2], -1), ep_params, True)
    v = mlp(jnp.concatenate([x2, ep, a2], -1), up_params, False)
    return v.reshape(B, T, 1)


# ----------------------------------------------------------------------------- demo
if __name__ == "__main__":
    obs_dim, act_dim, ep_dim = 16, 4, 8
    ep_hidden = (32, 32)
    up_hidden = (32, 32)

    # Deterministic synthetic parameters (shapes dictated by Value.__init__).
    ep_params = init_mlp(jax.random.PRNGKey(1), (obs_dim + act_dim, *ep_hidden, ep_dim))
    up_params = init_mlp(jax.random.PRNGKey(2), (obs_dim + ep_dim + act_dim, *up_hidden, 1))
    fused_params = prepare_value_params(ep_params, up_params, obs_dim, act_dim, ep_dim,
                                        compute_dtype=jnp.bfloat16)

    key = jax.random.PRNGKey(0)
    max_err = 0.0
    for (B, T) in ((2, 8), (4, 64)):     # small demo + a multi-chunk tile path
        key, kx, kl, ka = jax.random.split(key, 4)
        x = jax.random.normal(kx, (B, T, obs_dim), jnp.float32)
        lst_a = jax.random.normal(kl, (B, T, act_dim), jnp.float32)
        a = jax.random.normal(ka, (B, T, act_dim), jnp.float32)

        h_init = []  # make_init_state for the fc-only configuration
        value_out, h_out = value_forward(x, lst_a, a, h_init, fused_params)
        jax.block_until_ready(value_out)

        assert value_out.shape == (B, T, 1)
        assert h_out == []

        ref = value_reference(x, lst_a, a, ep_params, up_params)
        max_err = max(max_err, float(jnp.max(jnp.abs(value_out - ref))))

    # loose tolerance: hidden matmuls (and tanh on v6e/v7x) run in bf16
    assert max_err < 1e-1, f"kernel/reference mismatch: max abs err = {max_err}"

    print("KERNEL_OK")
</pallas_src>

<mosaic_0001>
module attributes {stable_mosaic.version = 11 : i64} {
  func.func @fused_value_kernel(%arg0: i32, %arg1: memref<8x24xbf16, #tpu.memory_space<vmem>>, %arg2: memref<24x256xbf16, #tpu.memory_space<vmem>>, %arg3: memref<1x128xf32, #tpu.memory_space<vmem>>, %arg4: memref<128x128xbf16, #tpu.memory_space<vmem>>, %arg5: memref<1x128xf32, #tpu.memory_space<vmem>>, %arg6: memref<128x128xbf16, #tpu.memory_space<vmem>>, %arg7: memref<1x128xf32, #tpu.memory_space<vmem>>, %arg8: memref<128x128xbf16, #tpu.memory_space<vmem>>, %arg9: memref<1x128xf32, #tpu.memory_space<vmem>>, %arg10: memref<128x128xbf16, #tpu.memory_space<vmem>>, %arg11: memref<1x128xf32, #tpu.memory_space<vmem>>, %arg12: memref<1x128xbf16, #tpu.memory_space<vmem>>, %arg13: memref<1xf32, #tpu.memory_space<smem>>, %arg14: memref<8x1xf32, #tpu.memory_space<vmem>>) attributes {dimension_semantics = [#tpu.dimension_semantics<parallel>], iteration_bounds = array<i64: 2>, scalar_prefetch = 0 : i64, scratch_operands = 0 : i64, tpu.core_type = #tpu.core_type<tc>, window_params = [{transform_indices = @transform_0, window_bounds = array<i64: 8, 24>}, {pipeline_mode = #tpu.pipeline_mode<synchronous>, transform_indices = @transform_1, window_bounds = array<i64: 24, 256>}, {pipeline_mode = #tpu.pipeline_mode<synchronous>, transform_indices = @transform_2, window_bounds = array<i64: 1, 128>}, {pipeline_mode = #tpu.pipeline_mode<synchronous>, transform_indices = @transform_3, window_bounds = array<i64: 128, 128>}, {pipeline_mode = #tpu.pipeline_mode<synchronous>, transform_indices = @transform_4, window_bounds = array<i64: 1, 128>}, {pipeline_mode = #tpu.pipeline_mode<synchronous>, transform_indices = @transform_5, window_bounds = array<i64: 128, 128>}, {pipeline_mode = #tpu.pipeline_mode<synchronous>, transform_indices = @transform_6, window_bounds = array<i64: 1, 128>}, {pipeline_mode = #tpu.pipeline_mode<synchronous>, transform_indices = @transform_7, window_bounds = array<i64: 128, 128>}, {pipeline_mode = #tpu.pipeline_mode<synchronous>, transform_indices = @transform_8, window_bounds = array<i64: 1, 128>}, {pipeline_mode = #tpu.pipeline_mode<synchronous>, transform_indices = @transform_9, window_bounds = array<i64: 128, 128>}, {pipeline_mode = #tpu.pipeline_mode<synchronous>, transform_indices = @transform_10, window_bounds = array<i64: 1, 128>}, {pipeline_mode = #tpu.pipeline_mode<synchronous>, transform_indices = @transform_11, window_bounds = array<i64: 1, 128>}, {transform_indices = @transform_12, window_bounds = array<i64: 1>}, {transform_indices = @transform_13, window_bounds = array<i64: 8, 1>}]} {
    %c0 = arith.constant 0 : index
    %c0_0 = arith.constant 0 : index
    %0 = vector.load %arg1[%c0, %c0_0] : memref<8x24xbf16, #tpu.memory_space<vmem>>, vector<8x24xbf16>
    %c0_1 = arith.constant 0 : index
    %c0_2 = arith.constant 0 : index
    %1 = vector.load %arg2[%c0_1, %c0_2] : memref<24x256xbf16, #tpu.memory_space<vmem>>, vector<24x256xbf16>
    %cst = arith.constant dense<0.000000e+00> : vector<8x256xf32>
    %2 = tpu.matmul %0, %1, %cst {dimension_numbers = #tpu.dot_dimension_numbers<[1], [0], [0], [1], [0, 0, 1, 1], [], []>} : vector<8x24xbf16>, vector<24x256xbf16>, vector<8x256xf32> -> vector<8x256xf32>
    %3 = vector.extract_strided_slice %2 {offsets = [0, 0], sizes = [8, 128], strides = [1, 1]} : vector<8x256xf32> to vector<8x128xf32>
    %4 = vector.extract_strided_slice %2 {offsets = [0, 128], sizes = [8, 128], strides = [1, 1]} : vector<8x256xf32> to vector<8x128xf32>
    %c0_3 = arith.constant 0 : index
    %c0_4 = arith.constant 0 : index
    %5 = vector.load %arg3[%c0_3, %c0_4] : memref<1x128xf32, #tpu.memory_space<vmem>>, vector<1x128xf32>
    %6 = vector.broadcast %5 : vector<1x128xf32> to vector<8x128xf32>
    %7 = arith.addf %3, %6 : vector<8x128xf32>
    %8 = math.tanh %7 : vector<8x128xf32>
    %9 = arith.truncf %8 : vector<8x128xf32> to vector<8x128xbf16>
    %c0_5 = arith.constant 0 : index
    %c0_6 = arith.constant 0 : index
    %10 = vector.load %arg4[%c0_5, %c0_6] : memref<128x128xbf16, #tpu.memory_space<vmem>>, vector<128x128xbf16>
    %cst_7 = arith.constant dense<0.000000e+00> : vector<8x128xf32>
    %11 = tpu.matmul %9, %10, %cst_7 {dimension_numbers = #tpu.dot_dimension_numbers<[1], [0], [0], [1], [0, 0, 1, 1], [], []>} : vector<8x128xbf16>, vector<128x128xbf16>, vector<8x128xf32> -> vector<8x128xf32>
    %c0_8 = arith.constant 0 : index
    %c0_9 = arith.constant 0 : index
    %12 = vector.load %arg5[%c0_8, %c0_9] : memref<1x128xf32, #tpu.memory_space<vmem>>, vector<1x128xf32>
    %13 = vector.broadcast %12 : vector<1x128xf32> to vector<8x128xf32>
    %14 = arith.addf %11, %13 : vector<8x128xf32>
    %15 = math.tanh %14 : vector<8x128xf32>
    %16 = arith.truncf %15 : vector<8x128xf32> to vector<8x128xbf16>
    %c0_10 = arith.constant 0 : index
    %c0_11 = arith.constant 0 : index
    %17 = vector.load %arg6[%c0_10, %c0_11] : memref<128x128xbf16, #tpu.memory_space<vmem>>, vector<128x128xbf16>
    %cst_12 = arith.constant dense<0.000000e+00> : vector<8x128xf32>
    %18 = tpu.matmul %16, %17, %cst_12 {dimension_numbers = #tpu.dot_dimension_numbers<[1], [0], [0], [1], [0, 0, 1, 1], [], []>} : vector<8x128xbf16>, vector<128x128xbf16>, vector<8x128xf32> -> vector<8x128xf32>
    %c0_13 = arith.constant 0 : index
    %c0_14 = arith.constant 0 : index
    %19 = vector.load %arg7[%c0_13, %c0_14] : memref<1x128xf32, #tpu.memory_space<vmem>>, vector<1x128xf32>
    %20 = vector.broadcast %19 : vector<1x128xf32> to vector<8x128xf32>
    %21 = arith.addf %18, %20 : vector<8x128xf32>
    %22 = math.tanh %21 : vector<8x128xf32>
    %23 = arith.truncf %22 : vector<8x128xf32> to vector<8x128xbf16>
    %c0_15 = arith.constant 0 : index
    %c0_16 = arith.constant 0 : index
    %24 = vector.load %arg8[%c0_15, %c0_16] : memref<128x128xbf16, #tpu.memory_space<vmem>>, vector<128x128xbf16>
    %cst_17 = arith.constant dense<0.000000e+00> : vector<8x128xf32>
    %25 = tpu.matmul %23, %24, %cst_17 {dimension_numbers = #tpu.dot_dimension_numbers<[1], [0], [0], [1], [0, 0, 1, 1], [], []>} : vector<8x128xbf16>, vector<128x128xbf16>, vector<8x128xf32> -> vector<8x128xf32>
    %26 = arith.addf %4, %25 : vector<8x128xf32>
    %c0_18 = arith.constant 0 : index
    %c0_19 = arith.constant 0 : index
    %27 = vector.load %arg9[%c0_18, %c0_19] : memref<1x128xf32, #tpu.memory_space<vmem>>, vector<1x128xf32>
    %28 = vector.broadcast %27 : vector<1x128xf32> to vector<8x128xf32>
    %29 = arith.addf %26, %28 : vector<8x128xf32>
    %30 = math.tanh %29 : vector<8x128xf32>
    %31 = arith.truncf %30 : vector<8x128xf32> to vector<8x128xbf16>
    %c0_20 = arith.constant 0 : index
    %c0_21 = arith.constant 0 : index
    %32 = vector.load %arg10[%c0_20, %c0_21] : memref<128x128xbf16, #tpu.memory_space<vmem>>, vector<128x128xbf16>
    %cst_22 = arith.constant dense<0.000000e+00> : vector<8x128xf32>
    %33 = tpu.matmul %31, %32, %cst_22 {dimension_numbers = #tpu.dot_dimension_numbers<[1], [0], [0], [1], [0, 0, 1, 1], [], []>} : vector<8x128xbf16>, vector<128x128xbf16>, vector<8x128xf32> -> vector<8x128xf32>
    %c0_23 = arith.constant 0 : index
    %c0_24 = arith.constant 0 : index
    %34 = vector.load %arg11[%c0_23, %c0_24] : memref<1x128xf32, #tpu.memory_space<vmem>>, vector<1x128xf32>
    %35 = vector.broadcast %34 : vector<1x128xf32> to vector<8x128xf32>
    %36 = arith.addf %33, %35 : vector<8x128xf32>
    %37 = math.tanh %36 : vector<8x128xf32>
    %38 = arith.truncf %37 : vector<8x128xf32> to vector<8x128xbf16>
    %c0_25 = arith.constant 0 : index
    %c0_26 = arith.constant 0 : index
    %39 = vector.load %arg12[%c0_25, %c0_26] : memref<1x128xbf16, #tpu.memory_space<vmem>>, vector<1x128xbf16>
    %c0_27 = arith.constant 0 : index
    %40 = memref.load %arg13[%c0_27] : memref<1xf32, #tpu.memory_space<smem>>
    %41 = vector.extract_strided_slice %38 {offsets = [0, 0], sizes = [1, 128], strides = [1, 1]} : vector<8x128xbf16> to vector<1x128xbf16>
    %42 = arith.extf %39 : vector<1x128xbf16> to vector<1x128xf32>
    %43 = arith.extf %41 : vector<1x128xbf16> to vector<1x128xf32>
    %cst_28 = arith.constant dense<0.000000e+00> : vector<1xf32>
    %44 = arith.mulf %42, %43 : vector<1x128xf32>
    %45 = vector.multi_reduction <add>, %44, %cst_28 [1] : vector<1x128xf32> to vector<1xf32>
    %46 = vector.shape_cast %45 : vector<1xf32> to vector<1x1xf32>
    %47 = vector.broadcast %40 : f32 to vector<1x1xf32>
    %48 = arith.addf %46, %47 : vector<1x1xf32>
    %c0_29 = arith.constant 0 : index
    %c0_30 = arith.constant 0 : index
    %49 = vector.load %arg14[%c0_29, %c0_30] : memref<8x1xf32, #tpu.memory_space<vmem>>, vector<1x1xf32>
    tpu.vector_store %arg14[%c0_29, %c0_30], %48 {strides = array<i32>} : memref<8x1xf32, #tpu.memory_space<vmem>>, vector<1x1xf32>,
    %50 = vector.extract_strided_slice %38 {offsets = [1, 0], sizes = [1, 128], strides = [1, 1]} : vector<8x128xbf16> to vector<1x128xbf16>
    %51 = arith.extf %39 : vector<1x128xbf16> to vector<1x128xf32>
    %52 = arith.extf %50 : vector<1x128xbf16> to vector<1x128xf32>
    %cst_31 = arith.constant dense<0.000000e+00> : vector<1xf32>
    %53 = arith.mulf %51, %52 : vector<1x128xf32>
    %54 = vector.multi_reduction <add>, %53, %cst_31 [1] : vector<1x128xf32> to vector<1xf32>
    %55 = vector.shape_cast %54 : vector<1xf32> to vector<1x1xf32>
    %56 = vector.broadcast %40 : f32 to vector<1x1xf32>
    %57 = arith.addf %55, %56 : vector<1x1xf32>
    %c1 = arith.constant 1 : index
    %c0_32 = arith.constant 0 : index
    %58 = vector.load %arg14[%c1, %c0_32] : memref<8x1xf32, #tpu.memory_space<vmem>>, vector<1x1xf32>
    tpu.vector_store %arg14[%c1, %c0_32], %57 {strides = array<i32>} : memref<8x1xf32, #tpu.memory_space<vmem>>, vector<1x1xf32>,
    %59 = vector.extract_strided_slice %38 {offsets = [2, 0], sizes = [1, 128], strides = [1, 1]} : vector<8x128xbf16> to vector<1x128xbf16>
    %60 = arith.extf %39 : vector<1x128xbf16> to vector<1x128xf32>
    %61 = arith.extf %59 : vector<1x128xbf16> to vector<1x128xf32>
    %cst_33 = arith.constant dense<0.000000e+00> : vector<1xf32>
    %62 = arith.mulf %60, %61 : vector<1x128xf32>
    %63 = vector.multi_reduction <add>, %62, %cst_33 [1] : vector<1x128xf32> to vector<1xf32>
    %64 = vector.shape_cast %63 : vector<1xf32> to vector<1x1xf32>
    %65 = vector.broadcast %40 : f32 to vector<1x1xf32>
    %66 = arith.addf %64, %65 : vector<1x1xf32>
    %c2 = arith.constant 2 : index
    %c0_34 = arith.constant 0 : index
    %67 = vector.load %arg14[%c2, %c0_34] : memref<8x1xf32, #tpu.memory_space<vmem>>, vector<1x1xf32>
    tpu.vector_store %arg14[%c2, %c0_34], %66 {strides = array<i32>} : memref<8x1xf32, #tpu.memory_space<vmem>>, vector<1x1xf32>,
    %68 = vector.extract_strided_slice %38 {offsets = [3, 0], sizes = [1, 128], strides = [1, 1]} : vector<8x128xbf16> to vector<1x128xbf16>
    %69 = arith.extf %39 : vector<1x128xbf16> to vector<1x128xf32>
    %70 = arith.extf %68 : vector<1x128xbf16> to vector<1x128xf32>
    %cst_35 = arith.constant dense<0.000000e+00> : vector<1xf32>
    %71 = arith.mulf %69, %70 : vector<1x128xf32>
    %72 = vector.multi_reduction <add>, %71, %cst_35 [1] : vector<1x128xf32> to vector<1xf32>
    %73 = vector.shape_cast %72 : vector<1xf32> to vector<1x1xf32>
    %74 = vector.broadcast %40 : f32 to vector<1x1xf32>
    %75 = arith.addf %73, %74 : vector<1x1xf32>
    %c3 = arith.constant 3 : index
    %c0_36 = arith.constant 0 : index
    %76 = vector.load %arg14[%c3, %c0_36] : memref<8x1xf32, #tpu.memory_space<vmem>>, vector<1x1xf32>
    tpu.vector_store %arg14[%c3, %c0_36], %75 {strides = array<i32>} : memref<8x1xf32, #tpu.memory_space<vmem>>, vector<1x1xf32>,
    %77 = vector.extract_strided_slice %38 {offsets = [4, 0], sizes = [1, 128], strides = [1, 1]} : vector<8x128xbf16> to vector<1x128xbf16>
    %78 = arith.extf %39 : vector<1x128xbf16> to vector<1x128xf32>
    %79 = arith.extf %77 : vector<1x128xbf16> to vector<1x128xf32>
    %cst_37 = arith.constant dense<0.000000e+00> : vector<1xf32>
    %80 = arith.mulf %78, %79 : vector<1x128xf32>
    %81 = vector.multi_reduction <add>, %80, %cst_37 [1] : vector<1x128xf32> to vector<1xf32>
    %82 = vector.shape_cast %81 : vector<1xf32> to vector<1x1xf32>
    %83 = vector.broadcast %40 : f32 to vector<1x1xf32>
    %84 = arith.addf %82, %83 : vector<1x1xf32>
    %c4 = arith.constant 4 : index
    %c0_38 = arith.constant 0 : index
    %85 = vector.load %arg14[%c4, %c0_38] : memref<8x1xf32, #tpu.memory_space<vmem>>, vector<1x1xf32>
    tpu.vector_store %arg14[%c4, %c0_38], %84 {strides = array<i32>} : memref<8x1xf32, #tpu.memory_space<vmem>>, vector<1x1xf32>,
    %86 = vector.extract_strided_slice %38 {offsets = [5, 0], sizes = [1, 128], strides = [1, 1]} : vector<8x128xbf16> to vector<1x128xbf16>
    %87 = arith.extf %39 : vector<1x128xbf16> to vector<1x128xf32>
    %88 = arith.extf %86 : vector<1x128xbf16> to vector<1x128xf32>
    %cst_39 = arith.constant dense<0.000000e+00> : vector<1xf32>
    %89 = arith.mulf %87, %88 : vector<1x128xf32>
    %90 = vector.multi_reduction <add>, %89, %cst_39 [1] : vector<1x128xf32> to vector<1xf32>
    %91 = vector.shape_cast %90 : vector<1xf32> to vector<1x1xf32>
    %92 = vector.broadcast %40 : f32 to vector<1x1xf32>
    %93 = arith.addf %91, %92 : vector<1x1xf32>
    %c5 = arith.constant 5 : index
    %c0_40 = arith.constant 0 : index
    %94 = vector.load %arg14[%c5, %c0_40] : memref<8x1xf32, #tpu.memory_space<vmem>>, vector<1x1xf32>
    tpu.vector_store %arg14[%c5, %c0_40], %93 {strides = array<i32>} : memref<8x1xf32, #tpu.memory_space<vmem>>, vector<1x1xf32>,
    %95 = vector.extract_strided_slice %38 {offsets = [6, 0], sizes = [1, 128], strides = [1, 1]} : vector<8x128xbf16> to vector<1x128xbf16>
    %96 = arith.extf %39 : vector<1x128xbf16> to vector<1x128xf32>
    %97 = arith.extf %95 : vector<1x128xbf16> to vector<1x128xf32>
    %cst_41 = arith.constant dense<0.000000e+00> : vector<1xf32>
    %98 = arith.mulf %96, %97 : vector<1x128xf32>
    %99 = vector.multi_reduction <add>, %98, %cst_41 [1] : vector<1x128xf32> to vector<1xf32>
    %100 = vector.shape_cast %99 : vector<1xf32> to vector<1x1xf32>
    %101 = vector.broadcast %40 : f32 to vector<1x1xf32>
    %102 = arith.addf %100, %101 : vector<1x1xf32>
    %c6 = arith.constant 6 : index
    %c0_42 = arith.constant 0 : index
    %103 = vector.load %arg14[%c6, %c0_42] : memref<8x1xf32, #tpu.memory_space<vmem>>, vector<1x1xf32>
    tpu.vector_store %arg14[%c6, %c0_42], %102 {strides = array<i32>} : memref<8x1xf32, #tpu.memory_space<vmem>>, vector<1x1xf32>,
    %104 = vector.extract_strided_slice %38 {offsets = [7, 0], sizes = [1, 128], strides = [1, 1]} : vector<8x128xbf16> to vector<1x128xbf16>
    %105 = arith.extf %39 : vector<1x128xbf16> to vector<1x128xf32>
    %106 = arith.extf %104 : vector<1x128xbf16> to vector<1x128xf32>
    %cst_43 = arith.constant dense<0.000000e+00> : vector<1xf32>
    %107 = arith.mulf %105, %106 : vector<1x128xf32>
    %108 = vector.multi_reduction <add>, %107, %cst_43 [1] : vector<1x128xf32> to vector<1xf32>
    %109 = vector.shape_cast %108 : vector<1xf32> to vector<1x1xf32>
    %110 = vector.broadcast %40 : f32 to vector<1x1xf32>
    %111 = arith.addf %109, %110 : vector<1x1xf32>
    %c7 = arith.constant 7 : index
    %c0_44 = arith.constant 0 : index
    %112 = vector.load %arg14[%c7, %c0_44] : memref<8x1xf32, #tpu.memory_space<vmem>>, vector<1x1xf32>
    tpu.vector_store %arg14[%c7, %c0_44], %111 {strides = array<i32>} : memref<8x1xf32, #tpu.memory_space<vmem>>, vector<1x1xf32>,
    return
  }
  func.func @transform_0(%arg0: i32) -> (i32, i32) {
    %c0_i32 = arith.constant 0 : i32
    %c0_i32_0 = arith.constant 0 : i32
    return %arg0, %c0_i32 : i32, i32
  }
  func.func @transform_1(%arg0: i32) -> (i32, i32) {
    %c0_i32 = arith.constant 0 : i32
    %c0_i32_0 = arith.constant 0 : i32
    %c0_i32_1 = arith.constant 0 : i32
    return %c0_i32, %c0_i32_0 : i32, i32
  }
  func.func @transform_2(%arg0: i32) -> (i32, i32) {
    %c0_i32 = arith.constant 0 : i32
    %c0_i32_0 = arith.constant 0 : i32
    %c0_i32_1 = arith.constant 0 : i32
    return %c0_i32, %c0_i32_0 : i32, i32
  }
  func.func @transform_3(%arg0: i32) -> (i32, i32) {
    %c0_i32 = arith.constant 0 : i32
    %c0_i32_0 = arith.constant 0 : i32
    %c0_i32_1 = arith.constant 0 : i32
    return %c0_i32, %c0_i32_0 : i32, i32
  }
  func.func @transform_4(%arg0: i32) -> (i32, i32) {
    %c0_i32 = arith.constant 0 : i32
    %c0_i32_0 = arith.constant 0 : i32
    %c0_i32_1 = arith.constant 0 : i32
    return %c0_i32, %c0_i32_0 : i32, i32
  }
  func.func @transform_5(%arg0: i32) -> (i32, i32) {
    %c0_i32 = arith.constant 0 : i32
    %c0_i32_0 = arith.constant 0 : i32
    %c0_i32_1 = arith.constant 0 : i32
    return %c0_i32, %c0_i32_0 : i32, i32
  }
  func.func @transform_6(%arg0: i32) -> (i32, i32) {
    %c0_i32 = arith.constant 0 : i32
    %c0_i32_0 = arith.constant 0 : i32
    %c0_i32_1 = arith.constant 0 : i32
    return %c0_i32, %c0_i32_0 : i32, i32
  }
  func.func @transform_7(%arg0: i32) -> (i32, i32) {
    %c0_i32 = arith.constant 0 : i32
    %c0_i32_0 = arith.constant 0 : i32
    %c0_i32_1 = arith.constant 0 : i32
    return %c0_i32, %c0_i32_0 : i32, i32
  }
  func.func @transform_8(%arg0: i32) -> (i32, i32) {
    %c0_i32 = arith.constant 0 : i32
    %c0_i32_0 = arith.constant 0 : i32
    %c0_i32_1 = arith.constant 0 : i32
    return %c0_i32, %c0_i32_0 : i32, i32
  }
  func.func @transform_9(%arg0: i32) -> (i32, i32) {
    %c0_i32 = arith.constant 0 : i32
    %c0_i32_0 = arith.constant 0 : i32
    %c0_i32_1 = arith.constant 0 : i32
    return %c0_i32, %c0_i32_0 : i32, i32
  }
  func.func @transform_10(%arg0: i32) -> (i32, i32) {
    %c0_i32 = arith.constant 0 : i32
    %c0_i32_0 = arith.constant 0 : i32
    %c0_i32_1 = arith.constant 0 : i32
    return %c0_i32, %c0_i32_0 : i32, i32
  }
  func.func @transform_11(%arg0: i32) -> (i32, i32) {
    %c0_i32 = arith.constant 0 : i32
    %c0_i32_0 = arith.constant 0 : i32
    %c0_i32_1 = arith.constant 0 : i32
    return %c0_i32, %c0_i32_0 : i32, i32
  }
  func.func @transform_12(%arg0: i32) -> i32 {
    %c0_i32 = arith.constant 0 : i32
    %c0_i32_0 = arith.constant 0 : i32
    return %c0_i32 : i32
  }
  func.func @transform_13(%arg0: i32) -> (i32, i32) {
    %c0_i32 = arith.constant 0 : i32
    %c0_i32_0 = arith.constant 0 : i32
    return %arg0, %c0_i32 : i32, i32
  }
}

</mosaic_0001>

<llo_original>
// kernel: tpu_custom_call.1
$region0: #{tpu_custom_call.1}
  #allocation0 [shape = 'u32[]', space=smem, size = 0x4, offset = 0x4, fixed_abs, tag = 'smem constant byte address 0x4 - core index']
  #allocation1 [shape = 'u32[144,128]{1,0:T(1,128)}', space=vmem, size = 0x12000, scoped, tag = 'internal scratch']
  #allocation2 [shape = 'f32[1]{0:T(128)S(6)}', space=smem, size = 0x200, scoped, tag = 'scoped memory for tpu_custom_call.1']
  %s0 = inlined_call_operand.hbm [shape: bf16[16,24], index: 0, kind: input, shape index: {}]
  %s1 = inlined_call_operand.hbm [shape: bf16[24,256], index: 1, kind: input, shape index: {}]
  %s2 = inlined_call_operand.vmem [shape: f32[1,128], index: 2, kind: input, shape index: {}]
  %s3 = inlined_call_operand.hbm [shape: bf16[128,128], index: 3, kind: input, shape index: {}]
  %s4 = inlined_call_operand.vmem [shape: f32[1,128], index: 4, kind: input, shape index: {}]
  %s5 = inlined_call_operand.hbm [shape: bf16[128,128], index: 5, kind: input, shape index: {}]
  %s6 = inlined_call_operand.vmem [shape: f32[1,128], index: 6, kind: input, shape index: {}]
  %s7 = inlined_call_operand.hbm [shape: bf16[128,128], index: 7, kind: input, shape index: {}]
  %s8 = inlined_call_operand.vmem [shape: f32[1,128], index: 8, kind: input, shape index: {}]
  %s9 = inlined_call_operand.hbm [shape: bf16[128,128], index: 9, kind: input, shape index: {}]
  %s10 = inlined_call_operand.vmem [shape: f32[1,128], index: 10, kind: input, shape index: {}]
  %s11 = inlined_call_operand.vmem [shape: bf16[1,128], index: 11, kind: input, shape index: {}]
  %s12 = inlined_call_operand.<no memory space> [shape: f32[1], index: 12, kind: input, shape index: {}]
  %s13 = inlined_call_operand.vmem [shape: f32[16,1], index: 13, kind: output, shape index: {}]
  %s14 = sld [smem:[#allocation0]]
  $region109: #{tpu_custom_call.1} parent=0
    _
  %s16 = ssub.s32 1, %s14
  %s17 = scalar_select 0, %s16, %s14
  %18 = sst [smem:[#allocation2]] %s12
  $region1: #{tpu_custom_call.1} parent=0
    #allocation3 [shape = 'u8[4096]{0}', space=vmem, size = 0x1000, scoped, tag = 'input window, operand 0']
    #allocation4 [shape = 's32[2]{0}', space=sflag, size = 0x8, scoped, tag = 'scoped memory for tpu_custom_call.1']
    #allocation5 [shape = 'u8[12288]{0}', space=vmem, size = 0x3000, scoped, tag = 'input window, operand 1, single buffered']
    #allocation6 [shape = 's32[1]{0}', space=sflag, size = 0x4, scoped, tag = 'scoped memory for tpu_custom_call.1']
    #allocation7 [shape = 'u8[32768]{0}', space=vmem, size = 0x8000, scoped, tag = 'input window, operand 3, single buffered']
    #allocation8 [shape = 'u8[32768]{0}', space=vmem, size = 0x8000, scoped, tag = 'input window, operand 5, single buffered']
    #allocation9 [shape = 's32[1]{0}', space=sflag, size = 0x4, scoped, tag = 'scoped memory for tpu_custom_call.1']
    #allocation10 [shape = 'u8[32768]{0}', space=vmem, size = 0x8000, scoped, tag = 'input window, operand 7, single buffered']
    #allocation11 [shape = 'u8[32768]{0}', space=vmem, size = 0x8000, scoped, tag = 'input window, operand 9, single buffered']
    #allocation12 [shape = 's32[1]{0}', space=sflag, size = 0x4, scoped, tag = 'scoped memory for tpu_custom_call.1']
    %19 = vsyncpa [#allocation4], 0
    %s20 = scalar_lea.sflag [#allocation4], 1
    %21 = vsyncpa %s20, 0
    %22 = vsyncpa [#allocation6], 0
    %23 = vsyncpa [#allocation9], 0
    %24 = vsyncpa [#allocation12], 0
    loop: start=0, step=1, limit=4
    $region2: #{tpu_custom_call.1} parent=1 // loop_pre_header
      _
    $region3: #{tpu_custom_call.1} parent=1 // loop_header
      %s26 = sphi 0, %s30
      %p27 = scmp.ge.s32.totalorder %s26, 4
      %s36 = sphi 0, %s38
      %s39 = sphi 0, %s36
      %s40 = sphi 0, %s39
      %s56 = sphi 0, %s40
      %s60 = sphi 0, %s60
      %s62 = sphi 0, %s60
      %s63 = sphi 0, %s62
      %s77 = sphi 0, %s63
      %s81 = sphi 0, %s81
      %s83 = sphi 0, %s81
      %s84 = sphi 0, %s83
      %s98 = sphi 0, %s84
      %s102 = sphi 0, %s102
      %s104 = sphi 0, %s102
      %s105 = sphi 0, %s104
      %s119 = sphi 0, %s105
      %s123 = sphi 0, %s123
      %s125 = sphi 0, %s123
      %s126 = sphi 0, %s125
      %s140 = sphi 0, %s126
      %s144 = sphi 0, %s144
      %s146 = sphi 0, %s144
      %s147 = sphi 0, %s146
      %s161 = sphi 0, %s147
      %s165 = sphi 0, %s165
      %s167 = sphi 0, %s165
      %s168 = sphi 0, %s167
      %s182 = sphi 0, %s168
      %s186 = sphi 0, %s186
      %s188 = sphi 0, %s186
      %s189 = sphi 0, %s188
      %s203 = sphi 0, %s189
      %s207 = sphi 0, %s207
      %s209 = sphi 0, %s207
      %s210 = sphi 0, %s209
      %s224 = sphi 0, %s210
      %s228 = sphi 0, %s228
      %s230 = sphi 0, %s228
      %s231 = sphi 0, %s230
      %s245 = sphi 0, %s231
      %s249 = sphi 0, %s249
      %s251 = sphi 0, %s249
      %s252 = sphi 0, %s251
      %s266 = sphi 0, %s252
      %s270 = sphi 0, %s270
      %s272 = sphi 0, %s270
      %s273 = sphi 0, %s272
      %s287 = sphi 0, %s273
      %s291 = sphi 0, %s291
      %s293 = sphi 0, %s291
      %s294 = sphi 0, %s293
      %s308 = sphi 0, %s294
      %s314 = sphi 0, %s316
      %s317 = sphi 0, %s314
      %s318 = sphi 0, %s317
      %s334 = sphi 0, %s318
    $region4: #{tpu_custom_call.1} parent=1 // loop_header_branch
      %29 = sbr.rel (%p27) target = $region8
    $region5: #{tpu_custom_call.1} parent=1 // loop_body
      %s31 = ssub.s32 %s26, 1
      %s32 = ssub.s32 %s26, 2
      %s33 = sadd.s32 %s26, 1
      %s34 = ssub.s32 %s26, %s33
      %p35 = scmp.eq.s32.totalorder %s34, 0
      %s37 = sadd.s32 %s36, 1
      %s38 = scalar_select %p35, %s36, %s37
      %p41 = pneg %p35
      %p42 = scmp.eq.s32.totalorder %s26, 1
      %p43 = por %p41, %p42
      %p44 = scmp.ne.s32.totalorder %s36, %s39
      %p45 = scmp.eq.s32.totalorder %s26, 0
      %p46 = por %p44, %p45
      %p47 = scmp.ne.s32.totalorder %s36, %s39
      %p48 = scmp.eq.s32.totalorder %s31, 1
      %p49 = por %p47, %p48
      %p50 = scmp.ne.s32.totalorder %s39, %s40
      %p51 = scmp.eq.s32.totalorder %s31, 0
      %p52 = por %p50, %p51
      %p53 = scmp.ne.s32.totalorder %s39, %s40
      %p54 = scmp.eq.s32.totalorder %s32, 1
      %p55 = por %p53, %p54
      %p57 = scmp.ne.s32.totalorder %s40, %s56
      %p58 = scmp.eq.s32.totalorder %s32, 0
      %p59 = por %p57, %p58
      %s61 = sadd.s32 %s60, 1
      %p64 = scmp.eq.s32.totalorder %s26, 1
      %p65 = scmp.ne.s32.totalorder %s60, %s62
      %p66 = scmp.eq.s32.totalorder %s26, 0
      %p67 = por %p65, %p66
      %p68 = scmp.ne.s32.totalorder %s60, %s62
      %p69 = scmp.eq.s32.totalorder %s31, 1
      %p70 = por %p68, %p69
      %p71 = scmp.ne.s32.totalorder %s62, %s63
      %p72 = scmp.eq.s32.totalorder %s31, 0
      %p73 = por %p71, %p72
      %p74 = scmp.ne.s32.totalorder %s62, %s63
      %p75 = scmp.eq.s32.totalorder %s32, 1
      %p76 = por %p74, %p75
      %p78 = scmp.ne.s32.totalorder %s63, %s77
      %p79 = scmp.eq.s32.totalorder %s32, 0
      %p80 = por %p78, %p79
      %s82 = sadd.s32 %s81, 1
      %p85 = scmp.eq.s32.totalorder %s26, 1
      %p86 = scmp.ne.s32.totalorder %s81, %s83
      %p87 = scmp.eq.s32.totalorder %s26, 0
      %p88 = por %p86, %p87
      %p89 = scmp.ne.s32.totalorder %s81, %s83
      %p90 = scmp.eq.s32.totalorder %s31, 1
      %p91 = por %p89, %p90
      %p92 = scmp.ne.s32.totalorder %s83, %s84
      %p93 = scmp.eq.s32.totalorder %s31, 0
      %p94 = por %p92, %p93
      %p95 = scmp.ne.s32.totalorder %s83, %s84
      %p96 = scmp.eq.s32.totalorder %s32, 1
      %p97 = por %p95, %p96
      %p99 = scmp.ne.s32.totalorder %s84, %s98
      %p100 = scmp.eq.s32.totalorder %s32, 0
      %p101 = por %p99, %p100
      %s103 = sadd.s32 %s102, 1
      %p106 = scmp.eq.s32.totalorder %s26, 1
      %p107 = scmp.ne.s32.totalorder %s102, %s104
      %p108 = scmp.eq.s32.totalorder %s26, 0
      %p109 = por %p107, %p108
      %p110 = scmp.ne.s32.totalorder %s102, %s104
      %p111 = scmp.eq.s32.totalorder %s31, 1
      %p112 = por %p110, %p111
      %p113 = scmp.ne.s32.totalorder %s104, %s105
      %p114 = scmp.eq.s32.totalorder %s31, 0
      %p115 = por %p113, %p114
      %p116 = scmp.ne.s32.totalorder %s104, %s105
      %p117 = scmp.eq.s32.totalorder %s32, 1
      %p118 = por %p116, %p117
      %p120 = scmp.ne.s32.totalorder %s105, %s119
      %p121 = scmp.eq.s32.totalorder %s32, 0
      %p122 = por %p120, %p121
      %s124 = sadd.s32 %s123, 1
      %p127 = scmp.eq.s32.totalorder %s26, 1
      %p128 = scmp.ne.s32.totalorder %s123, %s125
      %p129 = scmp.eq.s32.totalorder %s26, 0
      %p130 = por %p128, %p129
      %p131 = scmp.ne.s32.totalorder %s123, %s125
      %p132 = scmp.eq.s32.totalorder %s31, 1
      %p133 = por %p131, %p132
      %p134 = scmp.ne.s32.totalorder %s125, %s126
      %p135 = scmp.eq.s32.totalorder %s31, 0
      %p136 = por %p134, %p135
      %p137 = scmp.ne.s32.totalorder %s125, %s126
      %p138 = scmp.eq.s32.totalorder %s32, 1
      %p139 = por %p137, %p138
      %p141 = scmp.ne.s32.totalorder %s126, %s140
      %p142 = scmp.eq.s32.totalorder %s32, 0
      %p143 = por %p141, %p142
      %s145 = sadd.s32 %s144, 1
      %p148 = scmp.eq.s32.totalorder %s26, 1
      %p149 = scmp.ne.s32.totalorder %s144, %s146
      %p150 = scmp.eq.s32.totalorder %s26, 0
      %p151 = por %p149, %p150
      %p152 = scmp.ne.s32.totalorder %s144, %s146
      %p153 = scmp.eq.s32.totalorder %s31, 1
      %p154 = por %p152, %p153
      %p155 = scmp.ne.s32.totalorder %s146, %s147
      %p156 = scmp.eq.s32.totalorder %s31, 0
      %p157 = por %p155, %p156
      %p158 = scmp.ne.s32.totalorder %s146, %s147
      %p159 = scmp.eq.s32.totalorder %s32, 1
      %p160 = por %p158, %p159
      %p162 = scmp.ne.s32.totalorder %s147, %s161
      %p163 = scmp.eq.s32.totalorder %s32, 0
      %p164 = por %p162, %p163
      %s166 = sadd.s32 %s165, 1
      %p169 = scmp.eq.s32.totalorder %s26, 1
      %p170 = scmp.ne.s32.totalorder %s165, %s167
      %p171 = scmp.eq.s32.totalorder %s26, 0
      %p172 = por %p170, %p171
      %p173 = scmp.ne.s32.totalorder %s165, %s167
      %p174 = scmp.eq.s32.totalorder %s31, 1
      %p175 = por %p173, %p174
      %p176 = scmp.ne.s32.totalorder %s167, %s168
      %p177 = scmp.eq.s32.totalorder %s31, 0
      %p178 = por %p176, %p177
      %p179 = scmp.ne.s32.totalorder %s167, %s168
      %p180 = scmp.eq.s32.totalorder %s32, 1
      %p181 = por %p179, %p180
      %p183 = scmp.ne.s32.totalorder %s168, %s182
      %p184 = scmp.eq.s32.totalorder %s32, 0
      %p185 = por %p183, %p184
      %s187 = sadd.s32 %s186, 1
      %p190 = scmp.eq.s32.totalorder %s26, 1
      %p191 = scmp.ne.s32.totalorder %s186, %s188
      %p192 = scmp.eq.s32.totalorder %s26, 0
      %p193 = por %p191, %p192
      %p194 = scmp.ne.s32.totalorder %s186, %s188
      %p195 = scmp.eq.s32.totalorder %s31, 1
      %p196 = por %p194, %p195
      %p197 = scmp.ne.s32.totalorder %s188, %s189
      %p198 = scmp.eq.s32.totalorder %s31, 0
      %p199 = por %p197, %p198
      %p200 = scmp.ne.s32.totalorder %s188, %s189
      %p201 = scmp.eq.s32.totalorder %s32, 1
      %p202 = por %p200, %p201
      %p204 = scmp.ne.s32.totalorder %s189, %s203
      %p205 = scmp.eq.s32.totalorder %s32, 0
      %p206 = por %p204, %p205
      %s208 = sadd.s32 %s207, 1
      %p211 = scmp.eq.s32.totalorder %s26, 1
      %p212 = scmp.ne.s32.totalorder %s207, %s209
      %p213 = scmp.eq.s32.totalorder %s26, 0
      %p214 = por %p212, %p213
      %p215 = scmp.ne.s32.totalorder %s207, %s209
      %p216 = scmp.eq.s32.totalorder %s31, 1
      %p217 = por %p215, %p216
      %p218 = scmp.ne.s32.totalorder %s209, %s210
      %p219 = scmp.eq.s32.totalorder %s31, 0
      %p220 = por %p218, %p219
      %p221 = scmp.ne.s32.totalorder %s209, %s210
      %p222 = scmp.eq.s32.totalorder %s32, 1
      %p223 = por %p221, %p222
      %p225 = scmp.ne.s32.totalorder %s210, %s224
      %p226 = scmp.eq.s32.totalorder %s32, 0
      %p227 = por %p225, %p226
      %s229 = sadd.s32 %s228, 1
      %p232 = scmp.eq.s32.totalorder %s26, 1
      %p233 = scmp.ne.s32.totalorder %s228, %s230
      %p234 = scmp.eq.s32.totalorder %s26, 0
      %p235 = por %p233, %p234
      %p236 = scmp.ne.s32.totalorder %s228, %s230
      %p237 = scmp.eq.s32.totalorder %s31, 1
      %p238 = por %p236, %p237
      %p239 = scmp.ne.s32.totalorder %s230, %s231
      %p240 = scmp.eq.s32.totalorder %s31, 0
      %p241 = por %p239, %p240
      %p242 = scmp.ne.s32.totalorder %s230, %s231
      %p243 = scmp.eq.s32.totalorder %s32, 1
      %p244 = por %p242, %p243
      %p246 = scmp.ne.s32.totalorder %s231, %s245
      %p247 = scmp.eq.s32.totalorder %s32, 0
      %p248 = por %p246, %p247
      %s250 = sadd.s32 %s249, 1
      %p253 = scmp.eq.s32.totalorder %s26, 1
      %p254 = scmp.ne.s32.totalorder %s249, %s251
      %p255 = scmp.eq.s32.totalorder %s26, 0
      %p256 = por %p254, %p255
      %p257 = scmp.ne.s32.totalorder %s249, %s251
      %p258 = scmp.eq.s32.totalorder %s31, 1
      %p259 = por %p257, %p258
      %p260 = scmp.ne.s32.totalorder %s251, %s252
      %p261 = scmp.eq.s32.totalorder %s31, 0
      %p262 = por %p260, %p261
      %p263 = scmp.ne.s32.totalorder %s251, %s252
      %p264 = scmp.eq.s32.totalorder %s32, 1
      %p265 = por %p263, %p264
      %p267 = scmp.ne.s32.totalorder %s252, %s266
      %p268 = scmp.eq.s32.totalorder %s32, 0
      %p269 = por %p267, %p268
      %s271 = sadd.s32 %s270, 1
      %p274 = scmp.eq.s32.totalorder %s26, 1
      %p275 = scmp.ne.s32.totalorder %s270, %s272
      %p276 = scmp.eq.s32.totalorder %s26, 0
      %p277 = por %p275, %p276
      %p278 = scmp.ne.s32.totalorder %s270, %s272
      %p279 = scmp.eq.s32.totalorder %s31, 1
      %p280 = por %p278, %p279
      %p281 = scmp.ne.s32.totalorder %s272, %s273
      %p282 = scmp.eq.s32.totalorder %s31, 0
      %p283 = por %p281, %p282
      %p284 = scmp.ne.s32.totalorder %s272, %s273
      %p285 = scmp.eq.s32.totalorder %s32, 1
      %p286 = por %p284, %p285
      %p288 = scmp.ne.s32.totalorder %s273, %s287
      %p289 = scmp.eq.s32.totalorder %s32, 0
      %p290 = por %p288, %p289
      %s292 = sadd.s32 %s291, 1
      %p295 = scmp.eq.s32.totalorder %s26, 1
      %p296 = scmp.ne.s32.totalorder %s291, %s293
      %p297 = scmp.eq.s32.totalorder %s26, 0
      %p298 = por %p296, %p297
      %p299 = scmp.ne.s32.totalorder %s291, %s293
      %p300 = scmp.eq.s32.totalorder %s31, 1
      %p301 = por %p299, %p300
      %p302 = scmp.ne.s32.totalorder %s293, %s294
      %p303 = scmp.eq.s32.totalorder %s31, 0
      %p304 = por %p302, %p303
      %p305 = scmp.ne.s32.totalorder %s293, %s294
      %p306 = scmp.eq.s32.totalorder %s32, 1
      %p307 = por %p305, %p306
      %p309 = scmp.ne.s32.totalorder %s294, %s308
      %p310 = scmp.eq.s32.totalorder %s32, 0
      %p311 = por %p309, %p310
      %s312 = ssub.s32 %s26, %s33
      %p313 = scmp.eq.s32.totalorder %s312, 0
      %s315 = sadd.s32 %s314, 1
      %s316 = scalar_select %p313, %s314, %s315
      %p319 = pneg %p313
      %p320 = scmp.eq.s32.totalorder %s26, 1
      %p321 = por %p319, %p320
      %p322 = scmp.ne.s32.totalorder %s314, %s317
      %p323 = scmp.eq.s32.totalorder %s26, 0
      %p324 = por %p322, %p323
      %p325 = scmp.ne.s32.totalorder %s314, %s317
      %p326 = scmp.eq.s32.totalorder %s31, 1
      %p327 = por %p325, %p326
      %p328 = scmp.ne.s32.totalorder %s317, %s318
      %p329 = scmp.eq.s32.totalorder %s31, 0
      %p330 = por %p328, %p329
      %p331 = scmp.ne.s32.totalorder %s317, %s318
      %p332 = scmp.eq.s32.totalorder %s32, 1
      %p333 = por %p331, %p332
      %p335 = scmp.ne.s32.totalorder %s318, %s334
      %p336 = scmp.eq.s32.totalorder %s32, 0
      %p337 = por %p335, %p336
      %p338 = scmp.le.s32.totalorder 1, %s26
      %p339 = scmp.lt.s32.totalorder %s26, 3
      %p340 = pnand %p338, %p339
      %p341 = pneg %p340
      // Predicated region
      $region9: #{tpu_custom_call.1} parent=5 // pred_check
        _
      $region10: #{tpu_custom_call.1} parent=5 // pred_check_branch
        %343 = sbr.rel (%p340) target = $region12
      $region11: #{tpu_custom_call.1} parent=5 // pred_region
        %s344 = ssub.s32 %s26, 1
        // Predicated region
        $region13: #{tpu_custom_call.1} parent=11 // pred_check
          %p345 = pneg %p73
        $region14: #{tpu_custom_call.1} parent=11 // pred_check_branch
          %347 = sbr.rel (%p345) target = $region16
        $region15: #{tpu_custom_call.1} parent=11 // pred_region
          %s349 = ssub.s32 384, 384
          %350 = vsyncadd [#allocation6], %s349
          %s351 = sshll.u32 [#allocation5], 4
          %s352 = int_to_ptr.vmem [resolvable:$true] %s351
          %357 = dma.hbm_to_vmem [thread:$0]  %s1, 384, %s352, [#allocation6], 128, 128, 8
        $region16: #{tpu_custom_call.1} parent=11 // pred_fallthru
          _
        // Predicated region
        $region17: #{tpu_custom_call.1} parent=11 // pred_check
          %p358 = pneg %p94
        $region18: #{tpu_custom_call.1} parent=11 // pred_check_branch
          %360 = sbr.rel (%p358) target = $region20
        $region19: #{tpu_custom_call.1} parent=11 // pred_region
          _
        $region20: #{tpu_custom_call.1} parent=11 // pred_fallthru
          _
        // Predicated region
        $region21: #{tpu_custom_call.1} parent=11 // pred_check
          %p361 = pneg %p115
        $region22: #{tpu_custom_call.1} parent=11 // pred_check_branch
          %363 = sbr.rel (%p361) target = $region24
        $region23: #{tpu_custom_call.1} parent=11 // pred_region
          %s365 = ssub.s32 1024, 1024
          %366 = vsyncadd [#allocation6], %s365
          %s367 = sshll.u32 [#allocation7], 4
          %s368 = int_to_ptr.vmem [resolvable:$true] %s367
          %373 = dma.hbm_to_vmem [thread:$0]  %s3, 1024, %s368, [#allocation6], 64, 64, 4
        $region24: #{tpu_custom_call.1} parent=11 // pred_fallthru
          _
        // Predicated region
        $region25: #{tpu_custom_call.1} parent=11 // pred_check
          %p374 = pneg %p136
        $region26: #{tpu_custom_call.1} parent=11 // pred_check_branch
          %376 = sbr.rel (%p374) target = $region28
        $region27: #{tpu_custom_call.1} parent=11 // pred_region
          _
        $region28: #{tpu_custom_call.1} parent=11 // pred_fallthru
          _
        // Predicated region
        $region29: #{tpu_custom_call.1} parent=11 // pred_check
          %p377 = pneg %p157
        $region30: #{tpu_custom_call.1} parent=11 // pred_check_branch
          %379 = sbr.rel (%p377) target = $region32
        $region31: #{tpu_custom_call.1} parent=11 // pred_region
          %s381 = ssub.s32 1024, 1024
          %382 = vsyncadd [#allocation9], %s381
          %s383 = sshll.u32 [#allocation8], 4
          %s384 = int_to_ptr.vmem [resolvable:$true] %s383
          %389 = dma.hbm_to_vmem [thread:$0]  %s5, 1024, %s384, [#allocation9], 64, 64, 4
        $region32: #{tpu_custom_call.1} parent=11 // pred_fallthru
          _
        // Predicated region
        $region33: #{tpu_custom_call.1} parent=11 // pred_check
          %p390 = pneg %p178
        $region34: #{tpu_custom_call.1} parent=11 // pred_check_branch
          %392 = sbr.rel (%p390) target = $region36
        $region35: #{tpu_custom_call.1} parent=11 // pred_region
          _
        $region36: #{tpu_custom_call.1} parent=11 // pred_fallthru
          _
        // Predicated region
        $region37: #{tpu_custom_call.1} parent=11 // pred_check
          %p393 = pneg %p199
        $region38: #{tpu_custom_call.1} parent=11 // pred_check_branch
          %395 = sbr.rel (%p393) target = $region40
        $region39: #{tpu_custom_call.1} parent=11 // pred_region
          %s397 = ssub.s32 1024, 1024
          %398 = vsyncadd [#allocation9], %s397
          %s399 = sshll.u32 [#allocation10], 4
          %s400 = int_to_ptr.vmem [resolvable:$true] %s399
          %405 = dma.hbm_to_vmem [thread:$0]  %s7, 1024, %s400, [#allocation9], 64, 64, 4
        $region40: #{tpu_custom_call.1} parent=11 // pred_fallthru
          _
        // Predicated region
        $region41: #{tpu_custom_call.1} parent=11 // pred_check
          %p406 = pneg %p220
        $region42: #{tpu_custom_call.1} parent=11 // pred_check_branch
          %408 = sbr.rel (%p406) target = $region44
        $region43: #{tpu_custom_call.1} parent=11 // pred_region
          _
        $region44: #{tpu_custom_call.1} parent=11 // pred_fallthru
          _
        // Predicated region
        $region45: #{tpu_custom_call.1} parent=11 // pred_check
          %p409 = pneg %p241
        $region46: #{tpu_custom_call.1} parent=11 // pred_check_branch
          %411 = sbr.rel (%p409) target = $region48
        $region47: #{tpu_custom_call.1} parent=11 // pred_region
          %s413 = ssub.s32 1024, 1024
          %414 = vsyncadd [#allocation12], %s413
          %s415 = sshll.u32 [#allocation11], 4
          %s416 = int_to_ptr.vmem [resolvable:$true] %s415
          %421 = dma.hbm_to_vmem [thread:$0]  %s9, 1024, %s416, [#allocation12], 64, 64, 4
        $region48: #{tpu_custom_call.1} parent=11 // pred_fallthru
          _
        // Predicated region
        $region49: #{tpu_custom_call.1} parent=11 // pred_check
          %p422 = pneg %p262
        $region50: #{tpu_custom_call.1} parent=11 // pred_check_branch
          %424 = sbr.rel (%p422) target = $region52
        $region51: #{tpu_custom_call.1} parent=11 // pred_region
          _
        $region52: #{tpu_custom_call.1} parent=11 // pred_fallthru
          _
        // Predicated region
        $region53: #{tpu_custom_call.1} parent=11 // pred_check
          %p425 = pneg %p283
        $region54: #{tpu_custom_call.1} parent=11 // pred_check_branch
          %427 = sbr.rel (%p425) target = $region56
        $region55: #{tpu_custom_call.1} parent=11 // pred_region
          _
        $region56: #{tpu_custom_call.1} parent=11 // pred_fallthru
          _
        // Predicated region
        $region57: #{tpu_custom_call.1} parent=11 // pred_check
          %p428 = pneg %p304
        $region58: #{tpu_custom_call.1} parent=11 // pred_check_branch
          %430 = sbr.rel (%p428) target = $region60
        $region59: #{tpu_custom_call.1} parent=11 // pred_region
          _
        $region60: #{tpu_custom_call.1} parent=11 // pred_fallthru
          _
      $region12: #{tpu_custom_call.1} parent=5 // pred_fallthru
        _
      %p431 = scmp.lt.s32.totalorder %s26, 2
      // Predicated region
      $region61: #{tpu_custom_call.1} parent=5 // pred_check
        %p432 = pneg %p431
      $region62: #{tpu_custom_call.1} parent=5 // pred_check_branch
        %434 = sbr.rel (%p432) target = $region64
      $region63: #{tpu_custom_call.1} parent=5 // pred_region
        // Predicated region
        $region65: #{tpu_custom_call.1} parent=63 // pred_check
          %p435 = pneg %p46
        $region66: #{tpu_custom_call.1} parent=63 // pred_check_branch
          %437 = sbr.rel (%p435) target = $region68
        $region67: #{tpu_custom_call.1} parent=63 // pred_region
          %s438 = sand.u32 %s36, 1
          %s439 = scalar_lea.sflag [#allocation4], %s438
          %s440 = sand.u32 %s36, 1
          %s441 = smul.addr %s440, 4
          %s442 = scalar_lea.vmem [#allocation3], %s441
          %s444 = ssub.s32 64, 64
          %445 = vsyncadd %s439, %s444
          %s446 = smul.addr %s26, 64
          %s447 = scalar_lea.hbm %s0, %s446
          %s449 = sshll.u32 %s442, 4
          %s450 = int_to_ptr.vmem [resolvable:$true] %s449
          %452 = dma.hbm_to_vmem [thread:$0]  %s447, 64, %s450, %s439
        $region68: #{tpu_custom_call.1} parent=63 // pred_fallthru
          _
      $region64: #{tpu_custom_call.1} parent=5 // pred_fallthru
        _
      %p453 = scmp.le.s32.totalorder 1, %s26
      %p454 = scmp.lt.s32.totalorder %s26, 3
      %p455 = pnand %p453, %p454
      %p456 = pneg %p455
      // Predicated region
      $region69: #{tpu_custom_call.1} parent=5 // pred_check
        _
      $region70: #{tpu_custom_call.1} parent=5 // pred_check_branch
        %458 = sbr.rel (%p455) target = $region72
      $region71: #{tpu_custom_call.1} parent=5 // pred_region
        %s459 = ssub.s32 %s26, 1
        %s460 = sand.u32 %s39, 1
        %s461 = scalar_lea.sflag [#allocation4], %s460
        %s462 = sand.u32 %s39, 1
        %s463 = smul.addr %s462, 4
        %s464 = scalar_lea.vmem [#allocation3], %s463
        // Predicated region
        $region73: #{tpu_custom_call.1} parent=71 // pred_check
          %p465 = pneg %p52
        $region74: #{tpu_custom_call.1} parent=71 // pred_check_branch
          %467 = sbr.rel (%p465) target = $region76
        $region75: #{tpu_custom_call.1} parent=71 // pred_region
          %468 = dma.done %s461, 64
        $region76: #{tpu_custom_call.1} parent=71 // pred_fallthru
          _
        // Predicated region
        $region77: #{tpu_custom_call.1} parent=71 // pred_check
          %p469 = pneg %p73
        $region78: #{tpu_custom_call.1} parent=71 // pred_check_branch
          %471 = sbr.rel (%p469) target = $region80
        $region79: #{tpu_custom_call.1} parent=71 // pred_region
          %472 = dma.done [#allocation6], 384
        $region80: #{tpu_custom_call.1} parent=71 // pred_fallthru
          _
        // Predicated region
        $region81: #{tpu_custom_call.1} parent=71 // pred_check
          %p473 = pneg %p115
        $region82: #{tpu_custom_call.1} parent=71 // pred_check_branch
          %475 = sbr.rel (%p473) target = $region84
        $region83: #{tpu_custom_call.1} parent=71 // pred_region
          %476 = dma.done [#allocation6], 1024
        $region84: #{tpu_custom_call.1} parent=71 // pred_fallthru
          _
        // Predicated region
        $region85: #{tpu_custom_call.1} parent=71 // pred_check
          %p477 = pneg %p157
        $region86: #{tpu_custom_call.1} parent=71 // pred_check_branch
          %479 = sbr.rel (%p477) target = $region88
        $region87: #{tpu_custom_call.1} parent=71 // pred_region
          %480 = dma.done [#allocation9], 1024
        $region88: #{tpu_custom_call.1} parent=71 // pred_fallthru
          _
        // Predicated region
        $region89: #{tpu_custom_call.1} parent=71 // pred_check
          %p481 = pneg %p199
        $region90: #{tpu_custom_call.1} parent=71 // pred_check_branch
          %483 = sbr.rel (%p481) target = $region92
        $region91: #{tpu_custom_call.1} parent=71 // pred_region
          %484 = dma.done [#allocation9], 1024
        $region92: #{tpu_custom_call.1} parent=71 // pred_fallthru
          _
        // Predicated region
        $region93: #{tpu_custom_call.1} parent=71 // pred_check
          %p485 = pneg %p241
        $region94: #{tpu_custom_call.1} parent=71 // pred_check_branch
          %487 = sbr.rel (%p485) target = $region96
        $region95: #{tpu_custom_call.1} parent=71 // pred_region
          %488 = dma.done [#allocation12], 1024
        $region96: #{tpu_custom_call.1} parent=71 // pred_fallthru
          _
        %s489 = sand.u32 %s39, 1
        %s490 = scalar_lea.sflag [#allocation4], %s489
        %s491 = sand.u32 %s39, 1
        %s492 = smul.addr %s491, 4
        %s493 = scalar_lea.vmem [#allocation3], %s492
        %p494 = pneg %p52
        %p495 = pneg %p49
        %p496 = pneg %p73
        %p497 = pneg %p70
        %p498 = pneg %p94
        %p499 = pneg %p91
        %p500 = pneg %p115
        %p501 = pneg %p112
        %p502 = pneg %p136
        %p503 = pneg %p133
        %p504 = pneg %p157
        %p505 = pneg %p154
        %p506 = pneg %p178
        %p507 = pneg %p175
        %p508 = pneg %p199
        %p509 = pneg %p196
        %p510 = pneg %p220
        %p511 = pneg %p217
        %p512 = pneg %p241
        %p513 = pneg %p238
        %p514 = pneg %p262
        %p515 = pneg %p259
        %p516 = pneg %p283
        %p517 = pneg %p280
        %p518 = pneg %p304
        %p519 = pneg %p301
        %p520 = pneg %p330
        %p521 = pneg %p327
        %p522 = scmp.lt.s32.totalorder %s31, 1
        %s523 = scalar_select %p522, %s31, 1
        %s524 = smul.addr %s523, 8
        %s525 = scalar_lea.vmem %s13, %s524
        %p526 = scmp.lt.s32.totalorder %s31, 1
        %s527 = scalar_select %p526, %s31, 1
        %s528 = smul.addr %s527, 8
        %s529 = scalar_lea.vmem %s13, %s528
        %v531 = vld [vmem:[%s464] sm:$0xf]
        %v532 = vld [vmem:[#allocation5] sm:$0xff]
        %v533 = vld [vmem:[#allocation5 + $0x8] sm:$0xff]
        %v534 = vld [vmem:[#allocation5 + $0x10] sm:$0xff]
        %v538 = vunpack.c.l.b16 %v532
        %v539 = vunpack.c.h.b16 %v532
        %v540 = vunpack.c.l.b16 %v533
        %v541 = vunpack.c.h.b16 %v533
        %v542 = vunpack.c.l.b16 %v534
        %v543 = vunpack.c.h.b16 %v534
        %v544 = vpack.c.b16 %v540, %v538
        %v545 = vpack.c.b16 %v541, %v539
        %v546 = vpack.c.b16 %v542, %v542
        %v547 = vpack.c.b16 %v543, %v543
        %vm550 = vcmask 195584
        %v552 = vsel %vm550, %v531, 0
        %vm554 = vcmask 1043456
        %v556 = vsel %vm554, %v546, 0
        %v559 = vsel %vm554, %v547, 0
        %561 = vmatprep.subr.bf16.mxu0 0
        %562 = vmatpush1.bf16.msra.mxu0 0
        %563 = vmatprep.subr.bf16.mxu0 0
        %564 = vmatpush1.bf16.msra.mxu0 0
        %565 = vmatprep.subr.bf16.mxu0 0
        %566 = vmatpush1.bf16.msra.mxu0 0
        %567 = vmatprep.subr.bf16.mxu0 0
        %568 = vmatpush1.bf16.msra.mxu0 0
        %569 = vmatprep.subr.bf16.mxu0 0
        %570 = vmatpush1.bf16.msra.mxu0 0
        %571 = vmatprep.subr.bf16.mxu0 0
        %572 = vmatpush1.bf16.msra.mxu0 0
        %573 = vmatprep.subr.bf16.mxu0 %v559
        %574 = vmatpush1.bf16.msra.mxu0 %v556
        %575 = vmatprep.subr.bf16.mxu0 %v545
        %576 = vmatpush1.bf16.msra.mxu0 %v544
        %577 = vmatprep.subr.bf16.mxu0 0
        %578 = vmatpush2.bf16.msra.mxu0 0
        %579 = vmatprep.subr.bf16.mxu0 0
        %580 = vmatpush2.bf16.msra.mxu0 0
        %581 = vmatprep.subr.bf16.mxu0 0
        %582 = vmatpush2.bf16.msra.mxu0 0
        %583 = vmatprep.subr.bf16.mxu0 0
        %584 = vmatpush2.bf16.msra.mxu0 0
        %585 = vmatprep.subr.bf16.mxu0 0
        %586 = vmatpush2.bf16.msra.mxu0 0
        %587 = vmatprep.subr.bf16.mxu0 0
        %588 = vmatpush2.bf16.msra.mxu0 0
        %589 = vmatprep.subr.bf16.mxu0 0
        %590 = vmatpush2.bf16.msra.mxu0 0
        %591 = vmatprep.subr.bf16.mxu0 0
        %592 = vmatpush2.bf16.msra.mxu0 0
        %593 = vmatprep.mubr.bf16.mxu0 0
        %594 = vmatmul.mubr.bf16.gmra.mxu0 %v552
        %v595 = vpop.f32.mrf.mxu0
        %v596 = vadd.f32 0.0, %v595
        %v597 = vpop.f32.mrf.mxu0
        %v598 = vadd.f32 0.0, %v597
        %v599 = vpop.f32.mrf.mxu0
        %v600 = vpop.f32.mrf.mxu0
        %601 = vdwg.mxu0
        %v602 = vld [vmem:[%s2] sm:$0x1]
        %v604 = vlaneseq
        %v605 = vshrl.u32 %v604, 7
        %v606 = vsub.s32 0, %v605
        %v607 = vrot.slane %v602, %v606
        %v609 = vadd.f32 %v596, %v607
        %v610 = vtanh.pop %v609
        %v611 = vpack.c.bf16 %v610, %v610
        %v612 = vld [vmem:[#allocation7] sm:$0xf]
        %v613 = vld [vmem:[#allocation7 + $0x4] sm:$0xf]
        %v614 = vld [vmem:[#allocation7 + $0x8] sm:$0xf]
        %v615 = vld [vmem:[#allocation7 + $0xc] sm:$0xf]
        %v616 = vld [vmem:[#allocation7 + $0x10] sm:$0xf]
        %v617 = vld [vmem:[#allocation7 + $0x14] sm:$0xf]
        %v618 = vld [vmem:[#allocation7 + $0x18] sm:$0xf]
        %v619 = vld [vmem:[#allocation7 + $0x1c] sm:$0xf]
        %v620 = vld [vmem:[#allocation7 + $0x20] sm:$0xf]
        %v621 = vld [vmem:[#allocation7 + $0x24] sm:$0xf]
        %v622 = vld [vmem:[#allocation7 + $0x28] sm:$0xf]
        %v623 = vld [vmem:[#allocation7 + $0x2c] sm:$0xf]
        %v624 = vld [vmem:[#allocation7 + $0x30] sm:$0xf]
        %v625 = vld [vmem:[#allocation7 + $0x34] sm:$0xf]
        %v626 = vld [vmem:[#allocation7 + $0x38] sm:$0xf]
        %v627 = vld [vmem:[#allocation7 + $0x3c] sm:$0xf]
        %v628 = vld [vmem:[%s4] sm:$0x1]
        %v630 = vlaneseq
        %v631 = vshrl.u32 %v630, 7
        %v632 = vsub.s32 0, %v631
        %v633 = vrot.slane %v628, %v632
        %v651 = vunpack.c.l.b16 %v612
        %v652 = vunpack.c.l.b16 %v613
        %v653 = vunpack.c.l.b16 %v614
        %v654 = vunpack.c.l.b16 %v615
        %v655 = vunpack.c.l.b16 %v616
        %v656 = vunpack.c.l.b16 %v617
        %v657 = vunpack.c.l.b16 %v618
        %v658 = vunpack.c.l.b16 %v619
        %v659 = vunpack.c.l.b16 %v620
        %v660 = vunpack.c.l.b16 %v621
        %v661 = vunpack.c.l.b16 %v622
        %v662 = vunpack.c.l.b16 %v623
        %v663 = vunpack.c.l.b16 %v624
        %v664 = vunpack.c.l.b16 %v625
        %v665 = vunpack.c.l.b16 %v626
        %v666 = vunpack.c.l.b16 %v627
        %v667 = vpack.c.b16 %v652, %v651
        %v668 = vpack.c.b16 %v654, %v653
        %v669 = vpack.c.b16 %v656, %v655
        %v670 = vpack.c.b16 %v658, %v657
        %v671 = vpack.c.b16 %v660, %v659
        %v672 = vpack.c.b16 %v662, %v661
        %v673 = vpack.c.b16 %v664, %v663
        %v674 = vpack.c.b16 %v666, %v665
        %683 = vmatprep.subr.bf16.mxu0 0
        %684 = vmatpush1.bf16.msra.mxu0 %v674
        %685 = vmatprep.subr.bf16.mxu0 0
        %686 = vmatpush1.bf16.msra.mxu0 %v673
        %687 = vmatprep.subr.bf16.mxu0 0
        %688 = vmatpush1.bf16.msra.mxu0 %v672
        %689 = vmatprep.subr.bf16.mxu0 0
        %690 = vmatpush1.bf16.msra.mxu0 %v671
        %691 = vmatprep.subr.bf16.mxu0 0
        %692 = vmatpush1.bf16.msra.mxu0 %v670
        %693 = vmatprep.subr.bf16.mxu0 0
        %694 = vmatpush1.bf16.msra.mxu0 %v669
        %695 = vmatprep.subr.bf16.mxu0 0
        %696 = vmatpush1.bf16.msra.mxu0 %v668
        %697 = vmatprep.subr.bf16.mxu0 0
        %698 = vmatpush1.bf16.msra.mxu0 %v667
        %699 = vmatprep.subr.bf16.mxu0 0
        %700 = vmatpush2.bf16.msra.mxu0 0
        %701 = vmatprep.subr.bf16.mxu0 0
        %702 = vmatpush2.bf16.msra.mxu0 0
        %703 = vmatprep.subr.bf16.mxu0 0
        %704 = vmatpush2.bf16.msra.mxu0 0
        %705 = vmatprep.subr.bf16.mxu0 0
        %706 = vmatpush2.bf16.msra.mxu0 0
        %707 = vmatprep.subr.bf16.mxu0 0
        %708 = vmatpush2.bf16.msra.mxu0 0
        %709 = vmatprep.subr.bf16.mxu0 0
        %710 = vmatpush2.bf16.msra.mxu0 0
        %711 = vmatprep.subr.bf16.mxu0 0
        %712 = vmatpush2.bf16.msra.mxu0 0
        %713 = vmatprep.subr.bf16.mxu0 0
        %714 = vmatpush2.bf16.msra.mxu0 0
        %715 = vmatprep.mubr.bf16.mxu0 0
        %716 = vmatmul.mubr.bf16.gmra.mxu0 %v611
        %v717 = vpop.f32.mrf.mxu0
        %v718 = vadd.f32 %v633, %v717
        %v719 = vpop.f32.mrf.mxu0
        %v720 = vpop.f32.mrf.mxu0
        %v721 = vpop.f32.mrf.mxu0
        %722 = vdwg.mxu0
        %v723 = vtanh.pop %v718
        %v724 = vpack.c.bf16 %v723, %v723
        %v725 = vld [vmem:[#allocation8] sm:$0xf]
        %v726 = vld [vmem:[#allocation8 + $0x4] sm:$0xf]
        %v727 = vld [vmem:[#allocation8 + $0x8] sm:$0xf]
        %v728 = vld [vmem:[#allocation8 + $0xc] sm:$0xf]
        %v729 = vld [vmem:[#allocation8 + $0x10] sm:$0xf]
        %v730 = vld [vmem:[#allocation8 + $0x14] sm:$0xf]
        %v731 = vld [vmem:[#allocation8 + $0x18] sm:$0xf]
        %v732 = vld [vmem:[#allocation8 + $0x1c] sm:$0xf]
        %v733 = vld [vmem:[#allocation8 + $0x20] sm:$0xf]
        %v734 = vld [vmem:[#allocation8 + $0x24] sm:$0xf]
        %v735 = vld [vmem:[#allocation8 + $0x28] sm:$0xf]
        %v736 = vld [vmem:[#allocation8 + $0x2c] sm:$0xf]
        %v737 = vld [vmem:[#allocation8 + $0x30] sm:$0xf]
        %v738 = vld [vmem:[#allocation8 + $0x34] sm:$0xf]
        %v739 = vld [vmem:[#allocation8 + $0x38] sm:$0xf]
        %v740 = vld [vmem:[#allocation8 + $0x3c] sm:$0xf]
        %v741 = vld [vmem:[%s6] sm:$0x1]
        %v743 = vlaneseq
        %v744 = vshrl.u32 %v743, 7
        %v745 = vsub.s32 0, %v744
        %v746 = vrot.slane %v741, %v745
        %v764 = vunpack.c.l.b16 %v725
        %v765 = vunpack.c.l.b16 %v726
        %v766 = vunpack.c.l.b16 %v727
        %v767 = vunpack.c.l.b16 %v728
        %v768 = vunpack.c.l.b16 %v729
        %v769 = vunpack.c.l.b16 %v730
        %v770 = vunpack.c.l.b16 %v731
        %v771 = vunpack.c.l.b16 %v732
        %v772 = vunpack.c.l.b16 %v733
        %v773 = vunpack.c.l.b16 %v734
        %v774 = vunpack.c.l.b16 %v735
        %v775 = vunpack.c.l.b16 %v736
        %v776 = vunpack.c.l.b16 %v737
        %v777 = vunpack.c.l.b16 %v738
        %v778 = vunpack.c.l.b16 %v739
        %v779 = vunpack.c.l.b16 %v740
        %v780 = vpack.c.b16 %v765, %v764
        %v781 = vpack.c.b16 %v767, %v766
        %v782 = vpack.c.b16 %v769, %v768
        %v783 = vpack.c.b16 %v771, %v770
        %v784 = vpack.c.b16 %v773, %v772
        %v785 = vpack.c.b16 %v775, %v774
        %v786 = vpack.c.b16 %v777, %v776
        %v787 = vpack.c.b16 %v779, %v778
        %796 = vmatprep.subr.bf16.mxu0 0
        %797 = vmatpush1.bf16.msra.mxu0 %v787
        %798 = vmatprep.subr.bf16.mxu0 0
        %799 = vmatpush1.bf16.msra.mxu0 %v786
        %800 = vmatprep.subr.bf16.mxu0 0
        %801 = vmatpush1.bf16.msra.mxu0 %v785
        %802 = vmatprep.subr.bf16.mxu0 0
        %803 = vmatpush1.bf16.msra.mxu0 %v784
        %804 = vmatprep.subr.bf16.mxu0 0
        %805 = vmatpush1.bf16.msra.mxu0 %v783
        %806 = vmatprep.subr.bf16.mxu0 0
        %807 = vmatpush1.bf16.msra.mxu0 %v782
        %808 = vmatprep.subr.bf16.mxu0 0
        %809 = vmatpush1.bf16.msra.mxu0 %v781
        %810 = vmatprep.subr.bf16.mxu0 0
        %811 = vmatpush1.bf16.msra.mxu0 %v780
        %812 = vmatprep.subr.bf16.mxu0 0
        %813 = vmatpush2.bf16.msra.mxu0 0
        %814 = vmatprep.subr.bf16.mxu0 0
        %815 = vmatpush2.bf16.msra.mxu0 0
        %816 = vmatprep.subr.bf16.mxu0 0
        %817 = vmatpush2.bf16.msra.mxu0 0
        %818 = vmatprep.subr.bf16.mxu0 0
        %819 = vmatpush2.bf16.msra.mxu0 0
        %820 = vmatprep.subr.bf16.mxu0 0
        %821 = vmatpush2.bf16.msra.mxu0 0
        %822 = vmatprep.subr.bf16.mxu0 0
        %823 = vmatpush2.bf16.msra.mxu0 0
        %824 = vmatprep.subr.bf16.mxu0 0
        %825 = vmatpush2.bf16.msra.mxu0 0
        %826 = vmatprep.subr.bf16.mxu0 0
        %827 = vmatpush2.bf16.msra.mxu0 0
        %828 = vmatprep.mubr.bf16.mxu0 0
        %829 = vmatmul.mubr.bf16.gmra.mxu0 %v724
        %v830 = vpop.f32.mrf.mxu0
        %v831 = vadd.f32 %v746, %v830
        %v832 = vpop.f32.mrf.mxu0
        %v833 = vpop.f32.mrf.mxu0
        %v834 = vpop.f32.mrf.mxu0
        %835 = vdwg.mxu0
        %v836 = vtanh.pop %v831
        %v837 = vpack.c.bf16 %v836, %v836
        %v838 = vld [vmem:[#allocation10] sm:$0xf]
        %v839 = vld [vmem:[#allocation10 + $0x4] sm:$0xf]
        %v840 = vld [vmem:[#allocation10 + $0x8] sm:$0xf]
        %v841 = vld [vmem:[#allocation10 + $0xc] sm:$0xf]
        %v842 = vld [vmem:[#allocation10 + $0x10] sm:$0xf]
        %v843 = vld [vmem:[#allocation10 + $0x14] sm:$0xf]
        %v844 = vld [vmem:[#allocation10 + $0x18] sm:$0xf]
        %v845 = vld [vmem:[#allocation10 + $0x1c] sm:$0xf]
        %v846 = vld [vmem:[#allocation10 + $0x20] sm:$0xf]
        %v847 = vld [vmem:[#allocation10 + $0x24] sm:$0xf]
        %v848 = vld [vmem:[#allocation10 + $0x28] sm:$0xf]
        %v849 = vld [vmem:[#allocation10 + $0x2c] sm:$0xf]
        %v850 = vld [vmem:[#allocation10 + $0x30] sm:$0xf]
        %v851 = vld [vmem:[#allocation10 + $0x34] sm:$0xf]
        %v852 = vld [vmem:[#allocation10 + $0x38] sm:$0xf]
        %v853 = vld [vmem:[#allocation10 + $0x3c] sm:$0xf]
        %v870 = vunpack.c.l.b16 %v838
        %v871 = vunpack.c.l.b16 %v839
        %v872 = vunpack.c.l.b16 %v840
        %v873 = vunpack.c.l.b16 %v841
        %v874 = vunpack.c.l.b16 %v842
        %v875 = vunpack.c.l.b16 %v843
        %v876 = vunpack.c.l.b16 %v844
        %v877 = vunpack.c.l.b16 %v845
        %v878 = vunpack.c.l.b16 %v846
        %v879 = vunpack.c.l.b16 %v847
        %v880 = vunpack.c.l.b16 %v848
        %v881 = vunpack.c.l.b16 %v849
        %v882 = vunpack.c.l.b16 %v850
        %v883 = vunpack.c.l.b16 %v851
        %v884 = vunpack.c.l.b16 %v852
        %v885 = vunpack.c.l.b16 %v853
        %v886 = vpack.c.b16 %v871, %v870
        %v887 = vpack.c.b16 %v873, %v872
        %v888 = vpack.c.b16 %v875, %v874
        %v889 = vpack.c.b16 %v877, %v876
        %v890 = vpack.c.b16 %v879, %v878
        %v891 = vpack.c.b16 %v881, %v880
        %v892 = vpack.c.b16 %v883, %v882
        %v893 = vpack.c.b16 %v885, %v884
        %902 = vmatprep.subr.bf16.mxu0 0
        %903 = vmatpush1.bf16.msra.mxu0 %v893
        %904 = vmatprep.subr.bf16.mxu0 0
        %905 = vmatpush1.bf16.msra.mxu0 %v892
        %906 = vmatprep.subr.bf16.mxu0 0
        %907 = vmatpush1.bf16.msra.mxu0 %v891
        %908 = vmatprep.subr.bf16.mxu0 0
        %909 = vmatpush1.bf16.msra.mxu0 %v890
        %910 = vmatprep.subr.bf16.mxu0 0
        %911 = vmatpush1.bf16.msra.mxu0 %v889
        %912 = vmatprep.subr.bf16.mxu0 0
        %913 = vmatpush1.bf16.msra.mxu0 %v888
        %914 = vmatprep.subr.bf16.mxu0 0
        %915 = vmatpush1.bf16.msra.mxu0 %v887
        %916 = vmatprep.subr.bf16.mxu0 0
        %917 = vmatpush1.bf16.msra.mxu0 %v886
        %918 = vmatprep.subr.bf16.mxu0 0
        %919 = vmatpush2.bf16.msra.mxu0 0
        %920 = vmatprep.subr.bf16.mxu0 0
        %921 = vmatpush2.bf16.msra.mxu0 0
        %922 = vmatprep.subr.bf16.mxu0 0
        %923 = vmatpush2.bf16.msra.mxu0 0
        %924 = vmatprep.subr.bf16.mxu0 0
        %925 = vmatpush2.bf16.msra.mxu0 0
        %926 = vmatprep.subr.bf16.mxu0 0
        %927 = vmatpush2.bf16.msra.mxu0 0
        %928 = vmatprep.subr.bf16.mxu0 0
        %929 = vmatpush2.bf16.msra.mxu0 0
        %930 = vmatprep.subr.bf16.mxu0 0
        %931 = vmatpush2.bf16.msra.mxu0 0
        %932 = vmatprep.subr.bf16.mxu0 0
        %933 = vmatpush2.bf16.msra.mxu0 0
        %934 = vmatprep.mubr.bf16.mxu0 0
        %935 = vmatmul.mubr.bf16.gmra.mxu0 %v837
        %v936 = vpop.f32.mrf.mxu0
        %v937 = vadd.f32 0.0, %v936
        %v938 = vpop.f32.mrf.mxu0
        %v939 = vpop.f32.mrf.mxu0
        %v940 = vpop.f32.mrf.mxu0
        %941 = vdwg.mxu0
        %v942 = vadd.f32 %v598, %v937
        %v943 = vld [vmem:[%s8] sm:$0x1]
        %v945 = vlaneseq
        %v946 = vshrl.u32 %v945, 7
        %v947 = vsub.s32 0, %v946
        %v948 = vrot.slane %v943, %v947
        %v950 = vadd.f32 %v942, %v948
        %v951 = vtanh.pop %v950
        %v952 = vpack.c.bf16 %v951, %v951
        %v953 = vld [vmem:[#allocation11] sm:$0xf]
        %v954 = vld [vmem:[#allocation11 + $0x4] sm:$0xf]
        %v955 = vld [vmem:[#allocation11 + $0x8] sm:$0xf]
        %v956 = vld [vmem:[#allocation11 + $0xc] sm:$0xf]
        %v957 = vld [vmem:[#allocation11 + $0x10] sm:$0xf]
        %v958 = vld [vmem:[#allocation11 + $0x14] sm:$0xf]
        %v959 = vld [vmem:[#allocation11 + $0x18] sm:$0xf]
        %v960 = vld [vmem:[#allocation11 + $0x1c] sm:$0xf]
        %v961 = vld [vmem:[#allocation11 + $0x20] sm:$0xf]
        %v962 = vld [vmem:[#allocation11 + $0x24] sm:$0xf]
        %v963 = vld [vmem:[#allocation11 + $0x28] sm:$0xf]
        %v964 = vld [vmem:[#allocation11 + $0x2c] sm:$0xf]
        %v965 = vld [vmem:[#allocation11 + $0x30] sm:$0xf]
        %v966 = vld [vmem:[#allocation11 + $0x34] sm:$0xf]
        %v967 = vld [vmem:[#allocation11 + $0x38] sm:$0xf]
        %v968 = vld [vmem:[#allocation11 + $0x3c] sm:$0xf]
        %v969 = vld [vmem:[%s10] sm:$0x1]
        %v971 = vlaneseq
        %v972 = vshrl.u32 %v971, 7
        %v973 = vsub.s32 0, %v972
        %v974 = vrot.slane %v969, %v973
        %v992 = vunpack.c.l.b16 %v953
        %v993 = vunpack.c.l.b16 %v954
        %v994 = vunpack.c.l.b16 %v955
        %v995 = vunpack.c.l.b16 %v956
        %v996 = vunpack.c.l.b16 %v957
        %v997 = vunpack.c.l.b16 %v958
        %v998 = vunpack.c.l.b16 %v959
        %v999 = vunpack.c.l.b16 %v960
        %v1000 = vunpack.c.l.b16 %v961
        %v1001 = vunpack.c.l.b16 %v962
        %v1002 = vunpack.c.l.b16 %v963
        %v1003 = vunpack.c.l.b16 %v964
        %v1004 = vunpack.c.l.b16 %v965
        %v1005 = vunpack.c.l.b16 %v966
        %v1006 = vunpack.c.l.b16 %v967
        %v1007 = vunpack.c.l.b16 %v968
        %v1008 = vpack.c.b16 %v993, %v992
        %v1009 = vpack.c.b16 %v995, %v994
        %v1010 = vpack.c.b16 %v997, %v996
        %v1011 = vpack.c.b16 %v999, %v998
        %v1012 = vpack.c.b16 %v1001, %v1000
        %v1013 = vpack.c.b16 %v1003, %v1002
        %v1014 = vpack.c.b16 %v1005, %v1004
        %v1015 = vpack.c.b16 %v1007, %v1006
        %1024 = vmatprep.subr.bf16.mxu0 0
        %1025 = vmatpush1.bf16.msra.mxu0 %v1015
        %1026 = vmatprep.subr.bf16.mxu0 0
        %1027 = vmatpush1.bf16.msra.mxu0 %v1014
        %1028 = vmatprep.subr.bf16.mxu0 0
        %1029 = vmatpush1.bf16.msra.mxu0 %v1013
        %1030 = vmatprep.subr.bf16.mxu0 0
        %1031 = vmatpush1.bf16.msra.mxu0 %v1012
        %1032 = vmatprep.subr.bf16.mxu0 0
        %1033 = vmatpush1.bf16.msra.mxu0 %v1011
        %1034 = vmatprep.subr.bf16.mxu0 0
        %1035 = vmatpush1.bf16.msra.mxu0 %v1010
        %1036 = vmatprep.subr.bf16.mxu0 0
        %1037 = vmatpush1.bf16.msra.mxu0 %v1009
        %1038 = vmatprep.subr.bf16.mxu0 0
        %1039 = vmatpush1.bf16.msra.mxu0 %v1008
        %1040 = vmatprep.subr.bf16.mxu0 0
        %1041 = vmatpush2.bf16.msra.mxu0 0
        %1042 = vmatprep.subr.bf16.mxu0 0
        %1043 = vmatpush2.bf16.msra.mxu0 0
        %1044 = vmatprep.subr.bf16.mxu0 0
        %1045 = vmatpush2.bf16.msra.mxu0 0
        %1046 = vmatprep.subr.bf16.mxu0 0
        %1047 = vmatpush2.bf16.msra.mxu0 0
        %1048 = vmatprep.subr.bf16.mxu0 0
        %1049 = vmatpush2.bf16.msra.mxu0 0
        %1050 = vmatprep.subr.bf16.mxu0 0
        %1051 = vmatpush2.bf16.msra.mxu0 0
        %1052 = vmatprep.subr.bf16.mxu0 0
        %1053 = vmatpush2.bf16.msra.mxu0 0
        %1054 = vmatprep.subr.bf16.mxu0 0
        %1055 = vmatpush2.bf16.msra.mxu0 0
        %1056 = vmatprep.mubr.bf16.mxu0 0
        %1057 = vmatmul.mubr.bf16.gmra.mxu0 %v952
        %v1058 = vpop.f32.mrf.mxu0
        %v1059 = vadd.f32 %v974, %v1058
        %v1060 = vpop.f32.mrf.mxu0
        %v1061 = vpop.f32.mrf.mxu0
        %v1062 = vpop.f32.mrf.mxu0
        %1063 = vdwg.mxu0
        %v1064 = vtanh.pop %v1059
        %v1065 = vpack.c.bf16 %v1064, %v1064
        %v1066 = vld [vmem:[%s11] sm:$0x1]
        %s1067 = sld [smem:[#allocation2]]
        %v1068 = vunpack.c.l.bf16 %v1066
        %v1069 = vunpack.c.l.bf16 %v1065
        %v1070 = vmul.f32 %v1068, %v1069
        %vm1071 = vcmask 1040384
        %v1072 = vsel %vm1071, %v1070, 0.0
        %1073 = vadd.xlane.f32.xlu0 %v1072
        %v1074 = vpop.xlane.xlu0 %1073
        %v1075 = vstv %s1067
        %v1076 = vadd.f32 %v1074, %v1075
        %vm1077 = vcmask 0
        %1078 = vst.msk [vmem:[%s529] sm:$0x1] %vm1077, %v1076
        %v1081 = vunpack.c.l.s4 1983009808
        %v1082 = vunpack.c.0.s8 %v1081
        %v1083 = vlaneseq
        %v1084 = vshrl.u32 %v1083, 7
        %v1085 = vsub.s32 %v1082, %v1084
        %v1086 = vrot.slane %v1069, %v1085
        %v1087 = vrot.slane %v1086, 7
        %v1088 = vrot.slane %v1087, 2
        %v1090 = vmul.f32 %v1068, %v1088
        %v1091 = vsel %vm1071, %v1090, 0.0
        %1092 = vadd.xlane.f32.xlu0 %v1091
        %v1093 = vpop.xlane.xlu0 %1092
        %v1094 = vadd.f32 %v1093, %v1075
        %1095 = vst.msk [vmem:[%s529 + $0x1] sm:$0x1] %vm1077, %v1094
        %v1096 = vcombine.high %v1086, %v1086
        %v1098 = vmul.f32 %v1068, %v1096
        %v1099 = vsel %vm1071, %v1098, 0.0
        %1100 = vadd.xlane.f32.xlu0 %v1099
        %v1101 = vpop.xlane.xlu0 %1100
        %v1102 = vadd.f32 %v1101, %v1075
        %1103 = vst.msk [vmem:[%s529 + $0x2] sm:$0x1] %vm1077, %v1102
        %v1104 = vrot.slane %v1096, 7
        %v1105 = vrot.slane %v1104, 2
        %v1107 = vmul.f32 %v1068, %v1105
        %v1108 = vsel %vm1071, %v1107, 0.0
        %1109 = vadd.xlane.f32.xlu0 %v1108
        %v1110 = vpop.xlane.xlu0 %1109
        %v1111 = vadd.f32 %v1110, %v1075
        %1112 = vst.msk [vmem:[%s529 + $0x3] sm:$0x1] %vm1077, %v1111
        %v1113 = vcombine.high %v1069, %v1069
        %v1115 = vunpack.c.l.s4 1983009808
        %v1116 = vunpack.c.0.s8 %v1115
        %v1117 = vlaneseq
        %v1118 = vshrl.u32 %v1117, 7
        %v1119 = vsub.s32 %v1116, %v1118
        %v1120 = vrot.slane %v1113, %v1119
        %v1122 = vmul.f32 %v1068, %v1120
        %v1123 = vsel %vm1071, %v1122, 0.0
        %1124 = vadd.xlane.f32.xlu0 %v1123
        %v1125 = vpop.xlane.xlu0 %1124
        %v1126 = vadd.f32 %v1125, %v1075
        %1127 = vst.msk [vmem:[%s529 + $0x4] sm:$0x1] %vm1077, %v1126
        %v1128 = vrot.slane %v1120, 7
        %v1129 = vrot.slane %v1128, 2
        %v1131 = vmul.f32 %v1068, %v1129
        %v1132 = vsel %vm1071, %v1131, 0.0
        %1133 = vadd.xlane.f32.xlu0 %v1132
        %v1134 = vpop.xlane.xlu0 %1133
        %v1135 = vadd.f32 %v1134, %v1075
        %1136 = vst.msk [vmem:[%s529 + $0x5] sm:$0x1] %vm1077, %v1135
        %v1137 = vcombine.high %v1120, %v1120
        %v1139 = vmul.f32 %v1068, %v1137
        %v1140 = vsel %vm1071, %v1139, 0.0
        %1141 = vadd.xlane.f32.xlu0 %v1140
        %v1142 = vpop.xlane.xlu0 %1141
        %v1143 = vadd.f32 %v1142, %v1075
        %1144 = vst.msk [vmem:[%s529 + $0x6] sm:$0x1] %vm1077, %v1143
        %v1145 = vrot.slane %v1137, 7
        %v1146 = vrot.slane %v1145, 2
        %v1148 = vmul.f32 %v1068, %v1146
        %v1149 = vsel %vm1071, %v1148, 0.0
        %1150 = vadd.xlane.f32.xlu0 %v1149
        %v1151 = vpop.xlane.xlu0 %1150
        %v1152 = vadd.f32 %v1151, %v1075
        %1153 = vst.msk [vmem:[%s529 + $0x7] sm:$0x1] %vm1077, %v1152
        %p1154 = scmp.lt.s32.totalorder %s31, 1
        %s1155 = scalar_select %p1154, %s31, 1
        %s1156 = smul.addr %s1155, 8
        %s1157 = scalar_lea.vmem %s13, %s1156
        // Predicated region
        $region97: #{tpu_custom_call.1} parent=71 // pred_check
          %p1158 = pneg %p327
        $region98: #{tpu_custom_call.1} parent=71 // pred_check_branch
          %1160 = sbr.rel (%p1158) target = $region100
        $region99: #{tpu_custom_call.1} parent=71 // pred_region
          _
        $region100: #{tpu_custom_call.1} parent=71 // pred_fallthru
          _
      $region72: #{tpu_custom_call.1} parent=5 // pred_fallthru
        _
      %p1161 = scmp.le.s32.totalorder 2, %s26
      // Predicated region
      $region101: #{tpu_custom_call.1} parent=5 // pred_check
        %p1162 = pneg %p1161
      $region102: #{tpu_custom_call.1} parent=5 // pred_check_branch
        %1164 = sbr.rel (%p1162) target = $region104
      $region103: #{tpu_custom_call.1} parent=5 // pred_region
        %s1165 = ssub.s32 %s26, 2
        // Predicated region
        $region105: #{tpu_custom_call.1} parent=103 // pred_check
          %p1166 = pneg %p333
        $region106: #{tpu_custom_call.1} parent=103 // pred_check_branch
          %1168 = sbr.rel (%p1166) target = $region108
        $region107: #{tpu_custom_call.1} parent=103 // pred_region
          %p1169 = scmp.lt.s32.totalorder %s32, 1
          %s1170 = scalar_select %p1169, %s32, 1
          %s1171 = smul.addr %s1170, 8
          %s1172 = scalar_lea.vmem %s13, %s1171
        $region108: #{tpu_custom_call.1} parent=103 // pred_fallthru
          _
      $region104: #{tpu_custom_call.1} parent=5 // pred_fallthru
        _
    $region6: #{tpu_custom_call.1} parent=1 // loop_footer
      %s30 = sadd.s32 1, %s26
    $region7: #{tpu_custom_call.1} parent=1 // loop_footer_branch
      %25 = sbr.rel target = $region3
    $region8: #{tpu_custom_call.1} parent=1 // loop_exit
      _
    %1173 = vsyncpa [#allocation4], 1
    %s1174 = scalar_lea.sflag [#allocation4], 1
    %1175 = vsyncpa %s1174, 1
    %1176 = vsyncpa [#allocation6], 1
    %1177 = vsyncpa [#allocation9], 1
    %1178 = vsyncpa [#allocation12], 1

</llo_original>
